<compile_context>
chip_gen: v7x
topology: tpu7x:2x2x1
jax: 0.10.0
libtpu: 0.0.40
codegen_flags: <defaults>
</compile_context>

<pallas_src>
import jax
import jax.numpy as jnp
from jax.experimental import pallas as pl
from jax.experimental.pallas import tpu as pltpu


def fused_conv_bn_relu_1x1_kernel(x_ref, top_ref, bot_ref, w1_ref, b1_ref,
                                  w2_ref, o_ref, rows_ref):
    """One (batch, row-tile) grid step, lane-collapsed slab layout.

    x_ref:    (TH, W*Cin)        current row tile (bf16, slab layout)
    top_ref:  (1,  W*Cin)        row just above the tile (clamped at the edge)
    bot_ref:  (1,  W*Cin)        row just below the tile (clamped at the edge)
    w1_ref:   (3, W*Cin, W*Cmid) banded 3x3 weights (BN scale + zero-pad folded)
    b1_ref:   (1, W*Cmid)        folded BN bias, tiled over W (f32)
    w2_ref:   (W*Cmid, W*Ncls)   block-diagonal 1x1 projection weights
    o_ref:    (TH, W*Ncls)       bf16 output slab tile
    rows_ref: (TH+2, W*Cin)      VMEM scratch: tile rows + top/bottom halo rows
    """
    TH = x_ref.shape[0]
    WC_in = x_ref.shape[1]
    r = pl.program_id(1)
    last_r = pl.num_programs(1) - 1

    # ---- assemble TH+2 extended rows; every store is >=128 lanes wide -------
    rows_ref[1:TH + 1, :] = x_ref[...]

    @pl.when(r > 0)
    def _():
        rows_ref[0:1, :] = top_ref[...]

    @pl.when(r == 0)                       # image top edge: zero padding row
    def _():
        rows_ref[0:1, :] = jnp.zeros((1, WC_in), rows_ref.dtype)

    @pl.when(r < last_r)
    def _():
        rows_ref[TH + 1:TH + 2, :] = bot_ref[...]

    @pl.when(r == last_r)                  # image bottom edge: zero padding row
    def _():
        rows_ref[TH + 1:TH + 2, :] = jnp.zeros((1, WC_in), rows_ref.dtype)

    # ---- 3x3 conv = 3 dense banded matmuls (ky = 0,1,2), f32 accumulation ---
    # dx taps and left/right zero padding are folded into the band structure of
    # w1_ref, so there is no im2col, no roll and no boundary select here.
    acc = jnp.dot(rows_ref[0:TH, :], w1_ref[0],
                  preferred_element_type=jnp.float32)
    acc += jnp.dot(rows_ref[1:TH + 1, :], w1_ref[1],
                   preferred_element_type=jnp.float32)
    acc += jnp.dot(rows_ref[2:TH + 2, :], w1_ref[2],
                   preferred_element_type=jnp.float32)

    # BatchNorm bias + ReLU epilogue in f32.
    mid = jnp.maximum(acc + b1_ref[...], 0.0)

    # 1x1 conv = block-diagonal matmul; result is already in slab layout, so
    # the (TH, W*Ncls) store is lane-dense with no relayout.
    out = jnp.dot(mid.astype(w2_ref.dtype), w2_ref[...],
                  preferred_element_type=jnp.float32)
    o_ref[...] = out.astype(o_ref.dtype)


def _vmem_capacity_bytes(default=64 * 1024 * 1024):
    """Per-TensorCore VMEM capacity; conservative (v7x) default on failure."""
    try:
        return int(pltpu.get_tpu_info().vmem_capacity_bytes)
    except Exception:
        return default


def _pick_row_tile(H, WC_in, WC_mid, WC_out, in_isz, out_isz, budget_bytes,
                   max_rows):
    """Largest divisor of H whose per-step VMEM working set fits the budget."""
    # Resident weights (constant index_maps -> Pallas keeps ONE copy): count once.
    weight_bytes = (3 * WC_in * WC_mid + WC_mid * WC_out) * in_isz + WC_mid * 4
    divisors = sorted((d for d in range(1, H + 1) if H % d == 0), reverse=True)
    for th in divisors:
        if th > max_rows and th > 1:
            continue
        footprint = (
            2 * th * WC_in * in_isz            # double-buffered x tile
            + 2 * 2 * WC_in * in_isz           # double-buffered halo rows
            + 2 * th * WC_out * out_isz        # double-buffered output tile
            + (th + 2) * WC_in * in_isz        # extended-rows scratch
            + th * (2 * WC_mid + WC_out) * 4   # live f32 acc / mid / out values
            + weight_bytes)
        if footprint <= budget_bytes:
            return th
    return 1


def fused_conv_bn_relu_1x1(x_nchw, w1_oihw, gamma, beta, running_mean,
                           running_var, w2_oihw, *, eps=1e-5,
                           compute_dtype=jnp.bfloat16, out_dtype=jnp.bfloat16,
                           row_tile=None, vmem_budget_bytes=None,
                           vmem_limit_bytes=None):
    """Forward of ConvBNReLU(3x3) -> 1x1 conv.  PyTorch NCHW/OIHW conventions."""
    N, Cin, H, W = x_nchw.shape
    Cmid = w1_oihw.shape[0]
    Ncls = w2_oihw.shape[0]
    WC_in, WC_mid, WC_out = W * Cin, W * Cmid, W * Ncls

    # ---- per-generation VMEM sizing (review items 4/5/6) --------------------
    cap = _vmem_capacity_bytes()
    if vmem_budget_bytes is None:       # v7x (64 MiB): 24 MiB; v5e/v6e: 64 MiB
        vmem_budget_bytes = (3 * cap) // 8 if cap <= 64 * 2**20 else cap // 2
    if vmem_limit_bytes is None:        # v7x: 40 MiB; v5e/v6e: 96 MiB
        vmem_limit_bytes = (5 * cap) // 8 if cap <= 64 * 2**20 else (3 * cap) // 4
    max_rows = max(256, min(8192, (2048 * cap) // (64 * 2**20)))

    in_isz = jnp.dtype(compute_dtype).itemsize
    out_isz = jnp.dtype(out_dtype).itemsize
    if row_tile is None:
        row_tile = _pick_row_tile(H, WC_in, WC_mid, WC_out, in_isz, out_isz,
                                  vmem_budget_bytes, max_rows)
    TH = row_tile
    if H % TH != 0:
        raise ValueError(f"row_tile={TH} must divide H={H}")
    n_row_tiles = H // TH

    # ---- layout glue: NCHW -> NHWC -> (N, H, 1, W*Cin) bf16 slab -------------
    x_s = jnp.transpose(x_nchw, (0, 2, 3, 1)).astype(compute_dtype)
    x_s = x_s.reshape(N, H, 1, WC_in)

    # ---- fold BatchNorm (inference) into the 3x3 weights; build banded /
    #      block-diagonal slab weights (zero x-padding folded in) --------------
    scale = gamma / jnp.sqrt(running_var + eps)                    # (Cmid,)
    bias = beta - running_mean * scale                             # (Cmid,)
    w1_hwio = jnp.transpose(w1_oihw, (2, 3, 1, 0)) * scale[None, None, None, :]
    # S_kx[x_in, x_out] = 1 iff x_in == x_out + (kx - 1); missing rows at the
    # image border implement the conv's zero padding in x.
    shifts = [jnp.eye(W, W, k=1 - kx, dtype=jnp.float32) for kx in range(3)]
    w1b = jnp.stack([
        sum(jnp.einsum('io,cm->icom', shifts[kx], w1_hwio[ky, kx])
            for kx in range(3)).reshape(WC_in, WC_mid)
        for ky in range(3)]).astype(compute_dtype)                 # (3, WCin, WCmid)
    b1s = jnp.tile(bias, W).reshape(1, WC_mid).astype(jnp.float32)
    w2_cm = jnp.transpose(w2_oihw[:, :, 0, 0], (1, 0))             # (Cmid, Ncls)
    w2b = jnp.einsum('io,cn->icon', jnp.eye(W, dtype=jnp.float32), w2_cm)
    w2b = w2b.reshape(WC_mid, WC_out).astype(compute_dtype)        # block-diag

    out_s = pl.pallas_call(
        fused_conv_bn_relu_1x1_kernel,
        out_shape=jax.ShapeDtypeStruct((N, H, 1, WC_out), out_dtype),
        grid=(N, n_row_tiles),
        in_specs=[
            # Main row tile (slab layout, auto double-buffered).
            pl.BlockSpec((None, TH, None, WC_in), lambda n, r: (n, r, 0, 0)),
            # Halo rows above / below the tile (clamped at the image edges; the
            # kernel overwrites them with zeros there via pl.when).
            pl.BlockSpec((None, 1, None, WC_in),
                         lambda n, r: (n, jnp.maximum(r * TH - 1, 0), 0, 0)),
            pl.BlockSpec((None, 1, None, WC_in),
                         lambda n, r: (n, jnp.minimum(r * TH + TH, H - 1), 0, 0)),
            # Weights: constant index_maps -> single resident VMEM copy.
            pl.BlockSpec((3, WC_in, WC_mid), lambda n, r: (0, 0, 0)),
            pl.BlockSpec((1, WC_mid), lambda n, r: (0, 0)),
            pl.BlockSpec((WC_mid, WC_out), lambda n, r: (0, 0)),
        ],
        out_specs=pl.BlockSpec((None, TH, None, WC_out), lambda n, r: (n, r, 0, 0)),
        scratch_shapes=[pltpu.VMEM((TH + 2, WC_in), compute_dtype)],
        compiler_params=pltpu.CompilerParams(
            dimension_semantics=("parallel", "parallel"),
            vmem_limit_bytes=int(vmem_limit_bytes)),
    )(x_s, x_s, x_s, w1b, b1s, w2b)

    # Layout glue back to PyTorch-convention NCHW, f32.
    out = out_s.reshape(N, H, W, Ncls)
    return jnp.transpose(out, (0, 3, 1, 2)).astype(jnp.float32)


def reference(x_nchw, w1_oihw, gamma, beta, running_mean, running_var,
              w2_oihw, *, eps=1e-5, compute_dtype=jnp.bfloat16):
    """Pure-JAX reference (lax.conv) with the same dtype handling as the kernel."""
    scale = gamma / jnp.sqrt(running_var + eps)
    bias = beta - running_mean * scale
    w1 = (w1_oihw * scale[:, None, None, None]).astype(compute_dtype)
    x = x_nchw.astype(compute_dtype)
    y = jax.lax.conv_general_dilated(
        x, w1, window_strides=(1, 1), padding=((1, 1), (1, 1)),
        dimension_numbers=("NCHW", "OIHW", "NCHW"),
        preferred_element_type=jnp.float32)
    y = jnp.maximum(y + bias.reshape(1, -1, 1, 1), 0.0)
    y = jax.lax.conv_general_dilated(
        y.astype(compute_dtype), w2_oihw.astype(compute_dtype),
        window_strides=(1, 1), padding=((0, 0), (0, 0)),
        dimension_numbers=("NCHW", "OIHW", "NCHW"),
        preferred_element_type=jnp.float32)
    return y


if __name__ == "__main__":
    # Small shapes consistent with the Conv-BN-ReLU + 1x1 projection head
    # (in_chan=4, mid_chan=8, n_classes=4); H=W=32 so the row-tiled grid and
    # the in-kernel halo path are actually exercised.
    N, Cin, H, W = 2, 4, 32, 32
    Cmid, Ncls = 8, 4

    key = jax.random.PRNGKey(0)
    k_x, k_w1, k_w2, k_g, k_b, k_m, k_v = jax.random.split(key, 7)

    x = jax.random.normal(k_x, (N, Cin, H, W), dtype=jnp.float32)
    # kaiming_normal_(a=1): std = sqrt(1 / fan_in)
    w1 = jax.random.normal(k_w1, (Cmid, Cin, 3, 3), jnp.float32) * (1.0 / (Cin * 9)) ** 0.5
    w2 = jax.random.normal(k_w2, (Ncls, Cmid, 1, 1), jnp.float32) * (1.0 / Cmid) ** 0.5

    # Non-trivial BatchNorm affine + running stats (inference semantics).
    gamma = 1.0 + 0.1 * jax.random.normal(k_g, (Cmid,), jnp.float32)
    beta = 0.1 * jax.random.normal(k_b, (Cmid,), jnp.float32)
    running_mean = 0.1 * jax.random.normal(k_m, (Cmid,), jnp.float32)
    running_var = 1.0 + 0.1 * jax.random.uniform(k_v, (Cmid,), jnp.float32)

    ref = reference(x, w1, gamma, beta, running_mean, running_var, w2)

    # Explicit small row tile -> 4 row tiles per image (halo path exercised).
    out_tiled = fused_conv_bn_relu_1x1(
        x, w1, gamma, beta, running_mean, running_var, w2, row_tile=8)
    # Auto-sized row tile (whole image in one tile at these toy shapes).
    out_auto = fused_conv_bn_relu_1x1(
        x, w1, gamma, beta, running_mean, running_var, w2)

    jax.block_until_ready((out_tiled, out_auto, ref))

    assert out_tiled.shape == (N, Ncls, H, W), out_tiled.shape
    assert out_auto.shape == (N, Ncls, H, W), out_auto.shape
    # Kernel output is bf16 (slab writeback); allow for the final rounding.
    err_tiled = float(jnp.max(jnp.abs(out_tiled - ref)))
    err_auto = float(jnp.max(jnp.abs(out_auto - ref)))
    assert err_tiled < 3e-2, err_tiled
    assert err_auto < 3e-2, err_auto
    print("KERNEL_OK")
</pallas_src>

<mosaic_0001>
module attributes {stable_mosaic.version = 11 : i64} {
  func.func @fused_conv_bn_relu_1x1_kernel(%arg0: i32, %arg1: i32, %arg2: memref<1x8x1x128xbf16, #tpu.memory_space<vmem>>, %arg3: memref<1x1x1x128xbf16, #tpu.memory_space<vmem>>, %arg4: memref<1x1x1x128xbf16, #tpu.memory_space<vmem>>, %arg5: memref<3x128x256xbf16, #tpu.memory_space<vmem>>, %arg6: memref<1x256xf32, #tpu.memory_space<vmem>>, %arg7: memref<256x128xbf16, #tpu.memory_space<vmem>>, %arg8: memref<1x8x1x128xbf16, #tpu.memory_space<vmem>>, %arg9: memref<10x128xbf16, #tpu.memory_space<vmem>>) attributes {dimension_semantics = [#tpu.dimension_semantics<parallel>, #tpu.dimension_semantics<parallel>], iteration_bounds = array<i64: 2, 4>, scalar_prefetch = 0 : i64, scratch_operands = 1 : i64, tpu.core_type = #tpu.core_type<tc>, window_params = [{transform_indices = @transform_0, window_bounds = array<i64: 1, 8, 1, 128>}, {transform_indices = @transform_1, window_bounds = array<i64: 1, 1, 1, 128>}, {transform_indices = @transform_2, window_bounds = array<i64: 1, 1, 1, 128>}, {pipeline_mode = #tpu.pipeline_mode<synchronous>, transform_indices = @transform_3, window_bounds = array<i64: 3, 128, 256>}, {pipeline_mode = #tpu.pipeline_mode<synchronous>, transform_indices = @transform_4, window_bounds = array<i64: 1, 256>}, {pipeline_mode = #tpu.pipeline_mode<synchronous>, transform_indices = @transform_5, window_bounds = array<i64: 256, 128>}, {transform_indices = @transform_6, window_bounds = array<i64: 1, 8, 1, 128>}]} {
    %c0 = arith.constant 0 : index
    %c0_0 = arith.constant 0 : index
    %c0_1 = arith.constant 0 : index
    %c0_2 = arith.constant 0 : index
    %0 = vector.load %arg2[%c0, %c0_0, %c0_1, %c0_2] : memref<1x8x1x128xbf16, #tpu.memory_space<vmem>>, vector<1x8x1x128xbf16>
    %1 = vector.shape_cast %0 : vector<1x8x1x128xbf16> to vector<8x128xbf16>
    %c1 = arith.constant 1 : index
    %c0_3 = arith.constant 0 : index
    %2 = vector.load %arg9[%c1, %c0_3] : memref<10x128xbf16, #tpu.memory_space<vmem>>, vector<8x128xbf16>
    tpu.vector_store %arg9[%c1, %c0_3], %1 {strides = array<i32>} : memref<10x128xbf16, #tpu.memory_space<vmem>>, vector<8x128xbf16>,
    %c0_i32 = arith.constant 0 : i32
    %3 = arith.cmpi sgt, %arg1, %c0_i32 : i32
    %4 = arith.extui %3 : i1 to i32
    %c0_i32_4 = arith.constant 0 : i32
    %5 = arith.cmpi ne, %4, %c0_i32_4 : i32
    scf.if %5 {
      %c0_36 = arith.constant 0 : index
      %c0_37 = arith.constant 0 : index
      %c0_38 = arith.constant 0 : index
      %c0_39 = arith.constant 0 : index
      %41 = vector.load %arg3[%c0_36, %c0_37, %c0_38, %c0_39] : memref<1x1x1x128xbf16, #tpu.memory_space<vmem>>, vector<1x1x1x128xbf16>
      %42 = vector.shape_cast %41 : vector<1x1x1x128xbf16> to vector<1x128xbf16>
      %c0_40 = arith.constant 0 : index
      %c0_41 = arith.constant 0 : index
      %43 = vector.load %arg9[%c0_40, %c0_41] : memref<10x128xbf16, #tpu.memory_space<vmem>>, vector<1x128xbf16>
      tpu.vector_store %arg9[%c0_40, %c0_41], %42 {strides = array<i32>} : memref<10x128xbf16, #tpu.memory_space<vmem>>, vector<1x128xbf16>,
    } else {
    }
    %c0_i32_5 = arith.constant 0 : i32
    %6 = arith.cmpi eq, %arg1, %c0_i32_5 : i32
    %7 = arith.extui %6 : i1 to i32
    %c0_i32_6 = arith.constant 0 : i32
    %8 = arith.cmpi ne, %7, %c0_i32_6 : i32
    scf.if %8 {
      %cst_36 = arith.constant 0.000000e+00 : bf16
      %41 = vector.broadcast %cst_36 : bf16 to vector<1x128xbf16>
      %c0_37 = arith.constant 0 : index
      %c0_38 = arith.constant 0 : index
      %42 = vector.load %arg9[%c0_37, %c0_38] : memref<10x128xbf16, #tpu.memory_space<vmem>>, vector<1x128xbf16>
      tpu.vector_store %arg9[%c0_37, %c0_38], %41 {strides = array<i32>} : memref<10x128xbf16, #tpu.memory_space<vmem>>, vector<1x128xbf16>,
    } else {
    }
    %c3_i32 = arith.constant 3 : i32
    %9 = arith.cmpi slt, %arg1, %c3_i32 : i32
    %10 = arith.extui %9 : i1 to i32
    %c0_i32_7 = arith.constant 0 : i32
    %11 = arith.cmpi ne, %10, %c0_i32_7 : i32
    scf.if %11 {
      %c0_36 = arith.constant 0 : index
      %c0_37 = arith.constant 0 : index
      %c0_38 = arith.constant 0 : index
      %c0_39 = arith.constant 0 : index
      %41 = vector.load %arg4[%c0_36, %c0_37, %c0_38, %c0_39] : memref<1x1x1x128xbf16, #tpu.memory_space<vmem>>, vector<1x1x1x128xbf16>
      %42 = vector.shape_cast %41 : vector<1x1x1x128xbf16> to vector<1x128xbf16>
      %c9 = arith.constant 9 : index
      %c0_40 = arith.constant 0 : index
      %43 = vector.load %arg9[%c9, %c0_40] : memref<10x128xbf16, #tpu.memory_space<vmem>>, vector<1x128xbf16>
      tpu.vector_store %arg9[%c9, %c0_40], %42 {strides = array<i32>} : memref<10x128xbf16, #tpu.memory_space<vmem>>, vector<1x128xbf16>,
    } else {
    }
    %c3_i32_8 = arith.constant 3 : i32
    %12 = arith.cmpi eq, %arg1, %c3_i32_8 : i32
    %13 = arith.extui %12 : i1 to i32
    %c0_i32_9 = arith.constant 0 : i32
    %14 = arith.cmpi ne, %13, %c0_i32_9 : i32
    scf.if %14 {
      %cst_36 = arith.constant 0.000000e+00 : bf16
      %41 = vector.broadcast %cst_36 : bf16 to vector<1x128xbf16>
      %c9 = arith.constant 9 : index
      %c0_37 = arith.constant 0 : index
      %42 = vector.load %arg9[%c9, %c0_37] : memref<10x128xbf16, #tpu.memory_space<vmem>>, vector<1x128xbf16>
      tpu.vector_store %arg9[%c9, %c0_37], %41 {strides = array<i32>} : memref<10x128xbf16, #tpu.memory_space<vmem>>, vector<1x128xbf16>,
    } else {
    }
    %c0_10 = arith.constant 0 : index
    %c0_11 = arith.constant 0 : index
    %15 = vector.load %arg9[%c0_10, %c0_11] : memref<10x128xbf16, #tpu.memory_space<vmem>>, vector<8x128xbf16>
    %c0_12 = arith.constant 0 : index
    %c0_13 = arith.constant 0 : index
    %c0_14 = arith.constant 0 : index
    %16 = vector.load %arg5[%c0_12, %c0_13, %c0_14] : memref<3x128x256xbf16, #tpu.memory_space<vmem>>, vector<1x128x256xbf16>
    %17 = vector.shape_cast %16 : vector<1x128x256xbf16> to vector<128x256xbf16>
    %cst = arith.constant dense<0.000000e+00> : vector<8x256xf32>
    %18 = tpu.matmul %15, %17, %cst {dimension_numbers = #tpu.dot_dimension_numbers<[1], [0], [0], [1], [0, 0, 1, 1], [], []>} : vector<8x128xbf16>, vector<128x256xbf16>, vector<8x256xf32> -> vector<8x256xf32>
    %c1_15 = arith.constant 1 : index
    %c0_16 = arith.constant 0 : index
    %19 = vector.load %arg9[%c1_15, %c0_16] : memref<10x128xbf16, #tpu.memory_space<vmem>>, vector<8x128xbf16>
    %c1_17 = arith.constant 1 : index
    %c0_18 = arith.constant 0 : index
    %c0_19 = arith.constant 0 : index
    %20 = vector.load %arg5[%c1_17, %c0_18, %c0_19] : memref<3x128x256xbf16, #tpu.memory_space<vmem>>, vector<1x128x256xbf16>
    %21 = vector.shape_cast %20 : vector<1x128x256xbf16> to vector<128x256xbf16>
    %cst_20 = arith.constant dense<0.000000e+00> : vector<8x256xf32>
    %22 = tpu.matmul %19, %21, %cst_20 {dimension_numbers = #tpu.dot_dimension_numbers<[1], [0], [0], [1], [0, 0, 1, 1], [], []>} : vector<8x128xbf16>, vector<128x256xbf16>, vector<8x256xf32> -> vector<8x256xf32>
    %23 = arith.addf %18, %22 : vector<8x256xf32>
    %c2 = arith.constant 2 : index
    %c0_21 = arith.constant 0 : index
    %24 = vector.load %arg9[%c2, %c0_21] : memref<10x128xbf16, #tpu.memory_space<vmem>>, vector<8x128xbf16>
    %c2_22 = arith.constant 2 : index
    %c0_23 = arith.constant 0 : index
    %c0_24 = arith.constant 0 : index
    %25 = vector.load %arg5[%c2_22, %c0_23, %c0_24] : memref<3x128x256xbf16, #tpu.memory_space<vmem>>, vector<1x128x256xbf16>
    %26 = vector.shape_cast %25 : vector<1x128x256xbf16> to vector<128x256xbf16>
    %cst_25 = arith.constant dense<0.000000e+00> : vector<8x256xf32>
    %27 = tpu.matmul %24, %26, %cst_25 {dimension_numbers = #tpu.dot_dimension_numbers<[1], [0], [0], [1], [0, 0, 1, 1], [], []>} : vector<8x128xbf16>, vector<128x256xbf16>, vector<8x256xf32> -> vector<8x256xf32>
    %28 = arith.addf %23, %27 : vector<8x256xf32>
    %c0_26 = arith.constant 0 : index
    %c0_27 = arith.constant 0 : index
    %29 = vector.load %arg6[%c0_26, %c0_27] : memref<1x256xf32, #tpu.memory_space<vmem>>, vector<1x256xf32>
    %30 = vector.broadcast %29 : vector<1x256xf32> to vector<8x256xf32>
    %31 = arith.addf %28, %30 : vector<8x256xf32>
    %cst_28 = arith.constant 0.000000e+00 : f32
    %32 = vector.broadcast %cst_28 : f32 to vector<8x256xf32>
    %33 = arith.maximumf %31, %32 : vector<8x256xf32>
    %34 = arith.truncf %33 : vector<8x256xf32> to vector<8x256xbf16>
    %c0_29 = arith.constant 0 : index
    %c0_30 = arith.constant 0 : index
    %35 = vector.load %arg7[%c0_29, %c0_30] : memref<256x128xbf16, #tpu.memory_space<vmem>>, vector<256x128xbf16>
    %cst_31 = arith.constant dense<0.000000e+00> : vector<8x128xf32>
    %36 = tpu.matmul %34, %35, %cst_31 {dimension_numbers = #tpu.dot_dimension_numbers<[1], [0], [0], [1], [0, 0, 1, 1], [], []>} : vector<8x256xbf16>, vector<256x128xbf16>, vector<8x128xf32> -> vector<8x128xf32>
    %37 = arith.truncf %36 : vector<8x128xf32> to vector<8x128xbf16>
    %c0_32 = arith.constant 0 : index
    %c0_33 = arith.constant 0 : index
    %c0_34 = arith.constant 0 : index
    %c0_35 = arith.constant 0 : index
    %38 = vector.load %arg8[%c0_32, %c0_33, %c0_34, %c0_35] : memref<1x8x1x128xbf16, #tpu.memory_space<vmem>>, vector<1x8x1x128xbf16>
    %39 = vector.shape_cast %38 : vector<1x8x1x128xbf16> to vector<8x128xbf16>
    %40 = vector.shape_cast %37 : vector<8x128xbf16> to vector<1x8x1x128xbf16>
    tpu.vector_store %arg8[%c0_32, %c0_33, %c0_34, %c0_35], %40 {strides = array<i32>} : memref<1x8x1x128xbf16, #tpu.memory_space<vmem>>, vector<1x8x1x128xbf16>,
    return
  }
  func.func @transform_0(%arg0: i32, %arg1: i32) -> (i32, i32, i32, i32) {
    %c0_i32 = arith.constant 0 : i32
    %c0_i32_0 = arith.constant 0 : i32
    %c0_i32_1 = arith.constant 0 : i32
    return %arg0, %arg1, %c0_i32, %c0_i32_0 : i32, i32, i32, i32
  }
  func.func @transform_1(%arg0: i32, %arg1: i32) -> (i32, i32, i32, i32) {
    %c8_i32 = arith.constant 8 : i32
    %0 = arith.muli %arg1, %c8_i32 : i32
    %c1_i32 = arith.constant 1 : i32
    %1 = arith.subi %0, %c1_i32 : i32
    %c0_i32 = arith.constant 0 : i32
    %2 = arith.maxsi %1, %c0_i32 : i32
    %c0_i32_0 = arith.constant 0 : i32
    %c0_i32_1 = arith.constant 0 : i32
    %c0_i32_2 = arith.constant 0 : i32
    return %arg0, %2, %c0_i32_0, %c0_i32_1 : i32, i32, i32, i32
  }
  func.func @transform_2(%arg0: i32, %arg1: i32) -> (i32, i32, i32, i32) {
    %c8_i32 = arith.constant 8 : i32
    %0 = arith.muli %arg1, %c8_i32 : i32
    %c8_i32_0 = arith.constant 8 : i32
    %1 = arith.addi %0, %c8_i32_0 : i32
    %c31_i32 = arith.constant 31 : i32
    %2 = arith.minsi %1, %c31_i32 : i32
    %c0_i32 = arith.constant 0 : i32
    %c0_i32_1 = arith.constant 0 : i32
    %c0_i32_2 = arith.constant 0 : i32
    return %arg0, %2, %c0_i32, %c0_i32_1 : i32, i32, i32, i32
  }
  func.func @transform_3(%arg0: i32, %arg1: i32) -> (i32, i32, i32) {
    %c0_i32 = arith.constant 0 : i32
    %c0_i32_0 = arith.constant 0 : i32
    %c0_i32_1 = arith.constant 0 : i32
    %c0_i32_2 = arith.constant 0 : i32
    return %c0_i32, %c0_i32_0, %c0_i32_1 : i32, i32, i32
  }
  func.func @transform_4(%arg0: i32, %arg1: i32) -> (i32, i32) {
    %c0_i32 = arith.constant 0 : i32
    %c0_i32_0 = arith.constant 0 : i32
    %c0_i32_1 = arith.constant 0 : i32
    return %c0_i32, %c0_i32_0 : i32, i32
  }
  func.func @transform_5(%arg0: i32, %arg1: i32) -> (i32, i32) {
    %c0_i32 = arith.constant 0 : i32
    %c0_i32_0 = arith.constant 0 : i32
    %c0_i32_1 = arith.constant 0 : i32
    return %c0_i32, %c0_i32_0 : i32, i32
  }
  func.func @transform_6(%arg0: i32, %arg1: i32) -> (i32, i32, i32, i32) {
    %c0_i32 = arith.constant 0 : i32
    %c0_i32_0 = arith.constant 0 : i32
    %c0_i32_1 = arith.constant 0 : i32
    return %arg0, %arg1, %c0_i32, %c0_i32_0 : i32, i32, i32, i32
  }
}

</mosaic_0001>

<llo_original>
// kernel: tpu_custom_call.1
$region0: #{tpu_custom_call.1}
  #allocation0 [shape = 'u32[]', space=smem, size = 0x4, offset = 0x4, fixed_abs, tag = 'smem constant byte address 0x4 - core index']
  #allocation1 [shape = 'u32[144,128]{1,0:T(1,128)}', space=vmem, size = 0x12000, scoped, tag = 'internal scratch']
  #allocation2 [shape = 'bf16[10,128]{1,0:T(8,128)(2,1)}', space=vmem, size = 0x1000, scoped, tag = 'scratch operand']
  %s0 = inlined_call_operand.vmem [shape: bf16[2,32,1,128], index: 0, kind: input, shape index: {}]
  %s1 = inlined_call_operand.vmem [shape: bf16[2,32,1,128], index: 1, kind: input, shape index: {}]
  %s2 = inlined_call_operand.vmem [shape: bf16[2,32,1,128], index: 2, kind: input, shape index: {}]
  %s3 = inlined_call_operand.hbm [shape: bf16[3,128,256], index: 3, kind: input, shape index: {}]
  %s4 = inlined_call_operand.vmem [shape: f32[1,256], index: 4, kind: input, shape index: {}]
  %s5 = inlined_call_operand.vmem [shape: bf16[256,128], index: 5, kind: input, shape index: {}]
  %s6 = inlined_call_operand.vmem [shape: bf16[2,32,1,128], index: 6, kind: output, shape index: {}]
  %s7 = sld [smem:[#allocation0]]
  $region77: #{tpu_custom_call.1} parent=0
    _
  %s9 = ssub.s32 1, %s7
  %s10 = scalar_select 0, %s9, %s7
  $region1: #{tpu_custom_call.1} parent=0
    #allocation3 [shape = 'u8[196608]{0}', space=vmem, size = 0x30000, scoped, tag = 'input window, operand 3, single buffered']
    #allocation4 [shape = 's32[2]{0}', space=sflag, size = 0x8, scoped, tag = 'scoped memory for tpu_custom_call.1']
    %11 = vsyncpa [#allocation4], 0
    loop: start=0, step=1, limit=10
    $region2: #{tpu_custom_call.1} parent=1 // loop_pre_header
      _
    $region3: #{tpu_custom_call.1} parent=1 // loop_header
      %s13 = sphi 0, %s17
      %p14 = scmp.ge.s32.totalorder %s13, 10
      %s20 = sphi 0, %s32
      %s21 = sphi 0, %s28
      %s22 = sphi 0, %s20
      %s23 = sphi 0, %s21
      %s24 = sphi 0, %s22
      %s25 = sphi 0, %s23
      %s37 = sphi 0, %s39
      %s40 = sphi 0, %s37
      %s41 = sphi 0, %s40
      %s57 = sphi 0, %s41
      %s73 = sphi 0, %s75
      %s76 = sphi 0, %s73
      %s77 = sphi 0, %s76
      %s93 = sphi 0, %s77
      %s109 = sphi 0, %s111
      %s112 = sphi 0, %s109
      %s113 = sphi 0, %s112
      %s129 = sphi 0, %s113
      %s133 = sphi 0, %s133
      %s135 = sphi 0, %s133
      %s136 = sphi 0, %s135
      %s150 = sphi 0, %s136
      %s154 = sphi 0, %s154
      %s156 = sphi 0, %s154
      %s157 = sphi 0, %s156
      %s171 = sphi 0, %s157
      %s175 = sphi 0, %s175
      %s177 = sphi 0, %s175
      %s178 = sphi 0, %s177
      %s192 = sphi 0, %s178
      %s200 = sphi 0, %s202
      %s203 = sphi 0, %s200
      %s204 = sphi 0, %s203
      %s220 = sphi 0, %s204
    $region4: #{tpu_custom_call.1} parent=1 // loop_header_branch
      %16 = sbr.rel (%p14) target = $region8
    $region5: #{tpu_custom_call.1} parent=1 // loop_body
      %s18 = ssub.s32 %s13, 1
      %s19 = ssub.s32 %s13, 2
      %s26 = sadd.s32 1, %s21
      %p27 = scmp.ge.s32.totalorder %s26, 4
      %s28 = scalar_select %p27, 0, %s26
      %s29 = sadd.s32 1, %s20
      %s30 = scalar_select %p27, %s29, %s20
      %p31 = scmp.ge.s32.totalorder %s30, 2
      %s32 = scalar_select %p31, 0, %s30
      %s33 = ssub.s32 %s20, %s32
      %s34 = ssub.s32 %s21, %s28
      %s35 = sor.u32 %s33, %s34
      %p36 = scmp.eq.s32.totalorder %s35, 0
      %s38 = sadd.s32 %s37, 1
      %s39 = scalar_select %p36, %s37, %s38
      %p42 = pneg %p36
      %p43 = scmp.eq.s32.totalorder %s13, 7
      %p44 = por %p42, %p43
      %p45 = scmp.ne.s32.totalorder %s37, %s40
      %p46 = scmp.eq.s32.totalorder %s13, 0
      %p47 = por %p45, %p46
      %p48 = scmp.ne.s32.totalorder %s37, %s40
      %p49 = scmp.eq.s32.totalorder %s18, 7
      %p50 = por %p48, %p49
      %p51 = scmp.ne.s32.totalorder %s40, %s41
      %p52 = scmp.eq.s32.totalorder %s18, 0
      %p53 = por %p51, %p52
      %p54 = scmp.ne.s32.totalorder %s40, %s41
      %p55 = scmp.eq.s32.totalorder %s19, 7
      %p56 = por %p54, %p55
      %p58 = scmp.ne.s32.totalorder %s41, %s57
      %p59 = scmp.eq.s32.totalorder %s19, 0
      %p60 = por %p58, %p59
      %s61 = smul.u32 %s21, 8
      %s62 = ssub.s32 %s61, 1
      %p63 = scmp.gt.s32.totalorder %s62, 0
      %s64 = scalar_select %p63, %s62, 0
      %s65 = smul.u32 %s28, 8
      %s66 = ssub.s32 %s65, 1
      %p67 = scmp.gt.s32.totalorder %s66, 0
      %s68 = scalar_select %p67, %s66, 0
      %s69 = ssub.s32 %s20, %s32
      %s70 = ssub.s32 %s64, %s68
      %s71 = sor.u32 %s69, %s70
      %p72 = scmp.eq.s32.totalorder %s71, 0
      %s74 = sadd.s32 %s73, 1
      %s75 = scalar_select %p72, %s73, %s74
      %p78 = pneg %p72
      %p79 = scmp.eq.s32.totalorder %s13, 7
      %p80 = por %p78, %p79
      %p81 = scmp.ne.s32.totalorder %s73, %s76
      %p82 = scmp.eq.s32.totalorder %s13, 0
      %p83 = por %p81, %p82
      %p84 = scmp.ne.s32.totalorder %s73, %s76
      %p85 = scmp.eq.s32.totalorder %s18, 7
      %p86 = por %p84, %p85
      %p87 = scmp.ne.s32.totalorder %s76, %s77
      %p88 = scmp.eq.s32.totalorder %s18, 0
      %p89 = por %p87, %p88
      %p90 = scmp.ne.s32.totalorder %s76, %s77
      %p91 = scmp.eq.s32.totalorder %s19, 7
      %p92 = por %p90, %p91
      %p94 = scmp.ne.s32.totalorder %s77, %s93
      %p95 = scmp.eq.s32.totalorder %s19, 0
      %p96 = por %p94, %p95
      %s97 = smul.u32 %s21, 8
      %s98 = sadd.s32 %s97, 8
      %p99 = scmp.lt.s32.totalorder %s98, 31
      %s100 = scalar_select %p99, %s98, 31
      %s101 = smul.u32 %s28, 8
      %s102 = sadd.s32 %s101, 8
      %p103 = scmp.lt.s32.totalorder %s102, 31
      %s104 = scalar_select %p103, %s102, 31
      %s105 = ssub.s32 %s20, %s32
      %s106 = ssub.s32 %s100, %s104
      %s107 = sor.u32 %s105, %s106
      %p108 = scmp.eq.s32.totalorder %s107, 0
      %s110 = sadd.s32 %s109, 1
      %s111 = scalar_select %p108, %s109, %s110
      %p114 = pneg %p108
      %p115 = scmp.eq.s32.totalorder %s13, 7
      %p116 = por %p114, %p115
      %p117 = scmp.ne.s32.totalorder %s109, %s112
      %p118 = scmp.eq.s32.totalorder %s13, 0
      %p119 = por %p117, %p118
      %p120 = scmp.ne.s32.totalorder %s109, %s112
      %p121 = scmp.eq.s32.totalorder %s18, 7
      %p122 = por %p120, %p121
      %p123 = scmp.ne.s32.totalorder %s112, %s113
      %p124 = scmp.eq.s32.totalorder %s18, 0
      %p125 = por %p123, %p124
      %p126 = scmp.ne.s32.totalorder %s112, %s113
      %p127 = scmp.eq.s32.totalorder %s19, 7
      %p128 = por %p126, %p127
      %p130 = scmp.ne.s32.totalorder %s113, %s129
      %p131 = scmp.eq.s32.totalorder %s19, 0
      %p132 = por %p130, %p131
      %s134 = sadd.s32 %s133, 1
      %p137 = scmp.eq.s32.totalorder %s13, 7
      %p138 = scmp.ne.s32.totalorder %s133, %s135
      %p139 = scmp.eq.s32.totalorder %s13, 0
      %p140 = por %p138, %p139
      %p141 = scmp.ne.s32.totalorder %s133, %s135
      %p142 = scmp.eq.s32.totalorder %s18, 7
      %p143 = por %p141, %p142
      %p144 = scmp.ne.s32.totalorder %s135, %s136
      %p145 = scmp.eq.s32.totalorder %s18, 0
      %p146 = por %p144, %p145
      %p147 = scmp.ne.s32.totalorder %s135, %s136
      %p148 = scmp.eq.s32.totalorder %s19, 7
      %p149 = por %p147, %p148
      %p151 = scmp.ne.s32.totalorder %s136, %s150
      %p152 = scmp.eq.s32.totalorder %s19, 0
      %p153 = por %p151, %p152
      %s155 = sadd.s32 %s154, 1
      %p158 = scmp.eq.s32.totalorder %s13, 7
      %p159 = scmp.ne.s32.totalorder %s154, %s156
      %p160 = scmp.eq.s32.totalorder %s13, 0
      %p161 = por %p159, %p160
      %p162 = scmp.ne.s32.totalorder %s154, %s156
      %p163 = scmp.eq.s32.totalorder %s18, 7
      %p164 = por %p162, %p163
      %p165 = scmp.ne.s32.totalorder %s156, %s157
      %p166 = scmp.eq.s32.totalorder %s18, 0
      %p167 = por %p165, %p166
      %p168 = scmp.ne.s32.totalorder %s156, %s157
      %p169 = scmp.eq.s32.totalorder %s19, 7
      %p170 = por %p168, %p169
      %p172 = scmp.ne.s32.totalorder %s157, %s171
      %p173 = scmp.eq.s32.totalorder %s19, 0
      %p174 = por %p172, %p173
      %s176 = sadd.s32 %s175, 1
      %p179 = scmp.eq.s32.totalorder %s13, 7
      %p180 = scmp.ne.s32.totalorder %s175, %s177
      %p181 = scmp.eq.s32.totalorder %s13, 0
      %p182 = por %p180, %p181
      %p183 = scmp.ne.s32.totalorder %s175, %s177
      %p184 = scmp.eq.s32.totalorder %s18, 7
      %p185 = por %p183, %p184
      %p186 = scmp.ne.s32.totalorder %s177, %s178
      %p187 = scmp.eq.s32.totalorder %s18, 0
      %p188 = por %p186, %p187
      %p189 = scmp.ne.s32.totalorder %s177, %s178
      %p190 = scmp.eq.s32.totalorder %s19, 7
      %p191 = por %p189, %p190
      %p193 = scmp.ne.s32.totalorder %s178, %s192
      %p194 = scmp.eq.s32.totalorder %s19, 0
      %p195 = por %p193, %p194
      %s196 = ssub.s32 %s20, %s32
      %s197 = ssub.s32 %s21, %s28
      %s198 = sor.u32 %s196, %s197
      %p199 = scmp.eq.s32.totalorder %s198, 0
      %s201 = sadd.s32 %s200, 1
      %s202 = scalar_select %p199, %s200, %s201
      %p205 = pneg %p199
      %p206 = scmp.eq.s32.totalorder %s13, 7
      %p207 = por %p205, %p206
      %p208 = scmp.ne.s32.totalorder %s200, %s203
      %p209 = scmp.eq.s32.totalorder %s13, 0
      %p210 = por %p208, %p209
      %p211 = scmp.ne.s32.totalorder %s200, %s203
      %p212 = scmp.eq.s32.totalorder %s18, 7
      %p213 = por %p211, %p212
      %p214 = scmp.ne.s32.totalorder %s203, %s204
      %p215 = scmp.eq.s32.totalorder %s18, 0
      %p216 = por %p214, %p215
      %p217 = scmp.ne.s32.totalorder %s203, %s204
      %p218 = scmp.eq.s32.totalorder %s19, 7
      %p219 = por %p217, %p218
      %p221 = scmp.ne.s32.totalorder %s204, %s220
      %p222 = scmp.eq.s32.totalorder %s19, 0
      %p223 = por %p221, %p222
      %p224 = scmp.le.s32.totalorder 1, %s13
      %p225 = scmp.lt.s32.totalorder %s13, 9
      %p226 = pnand %p224, %p225
      %p227 = pneg %p226
      // Predicated region
      $region9: #{tpu_custom_call.1} parent=5 // pred_check
        _
      $region10: #{tpu_custom_call.1} parent=5 // pred_check_branch
        %229 = sbr.rel (%p226) target = $region12
      $region11: #{tpu_custom_call.1} parent=5 // pred_region
        %s230 = ssub.s32 %s13, 1
        // Predicated region
        $region13: #{tpu_custom_call.1} parent=11 // pred_check
          %p231 = pneg %p146
        $region14: #{tpu_custom_call.1} parent=11 // pred_check_branch
          %233 = sbr.rel (%p231) target = $region16
        $region15: #{tpu_custom_call.1} parent=11 // pred_region
          %s235 = ssub.s32 6144, 6144
          %236 = vsyncadd [#allocation4], %s235
          %s237 = sshll.u32 [#allocation3], 4
          %s238 = int_to_ptr.vmem [resolvable:$true] %s237
          %243 = dma.hbm_to_vmem [thread:$0]  %s3, 6144, %s238, [#allocation4], 128, 128, 8
        $region16: #{tpu_custom_call.1} parent=11 // pred_fallthru
          _
        // Predicated region
        $region17: #{tpu_custom_call.1} parent=11 // pred_check
          %p244 = pneg %p167
        $region18: #{tpu_custom_call.1} parent=11 // pred_check_branch
          %246 = sbr.rel (%p244) target = $region20
        $region19: #{tpu_custom_call.1} parent=11 // pred_region
          _
        $region20: #{tpu_custom_call.1} parent=11 // pred_fallthru
          _
        // Predicated region
        $region21: #{tpu_custom_call.1} parent=11 // pred_check
          %p247 = pneg %p188
        $region22: #{tpu_custom_call.1} parent=11 // pred_check_branch
          %249 = sbr.rel (%p247) target = $region24
        $region23: #{tpu_custom_call.1} parent=11 // pred_region
          _
        $region24: #{tpu_custom_call.1} parent=11 // pred_fallthru
          _
      $region12: #{tpu_custom_call.1} parent=5 // pred_fallthru
        _
      %p250 = scmp.lt.s32.totalorder %s13, 8
      // Predicated region
      $region25: #{tpu_custom_call.1} parent=5 // pred_check
        %p251 = pneg %p250
      $region26: #{tpu_custom_call.1} parent=5 // pred_check_branch
        %253 = sbr.rel (%p251) target = $region28
      $region27: #{tpu_custom_call.1} parent=5 // pred_region
        // Predicated region
        $region29: #{tpu_custom_call.1} parent=27 // pred_check
          %p254 = pneg %p47
        $region30: #{tpu_custom_call.1} parent=27 // pred_check_branch
          %256 = sbr.rel (%p254) target = $region32
        $region31: #{tpu_custom_call.1} parent=27 // pred_region
          %s257 = smul.u32 8, %s21
          %p258 = scmp.lt.s32.totalorder %s20, 1
          %s259 = scalar_select %p258, %s20, 1
          %p260 = scmp.lt.s32.totalorder %s257, 31
          %s261 = scalar_select %p260, %s257, 31
          %s262 = smul.addr %s259, 32
          %s263 = sadd.s32 %s261, %s262
          %s264 = scalar_lea.vmem %s0, %s263
          %s265 = smul.u32 8, %s21
        $region32: #{tpu_custom_call.1} parent=27 // pred_fallthru
          _
        // Predicated region
        $region33: #{tpu_custom_call.1} parent=27 // pred_check
          %p266 = pneg %p83
        $region34: #{tpu_custom_call.1} parent=27 // pred_check_branch
          %268 = sbr.rel (%p266) target = $region36
        $region35: #{tpu_custom_call.1} parent=27 // pred_region
          %s269 = smul.u32 %s21, 8
          %s270 = ssub.s32 %s269, 1
          %p271 = scmp.gt.s32.totalorder %s270, 0
          %s272 = scalar_select %p271, %s270, 0
          %p273 = scmp.lt.s32.totalorder %s20, 1
          %s274 = scalar_select %p273, %s20, 1
          %p275 = scmp.lt.s32.totalorder %s272, 31
          %s276 = scalar_select %p275, %s272, 31
          %s277 = smul.addr %s274, 32
          %s278 = sadd.s32 %s276, %s277
          %s279 = scalar_lea.vmem %s1, %s278
          %s280 = smul.u32 %s21, 8
          %s281 = ssub.s32 %s280, 1
          %p282 = scmp.gt.s32.totalorder %s281, 0
          %s283 = scalar_select %p282, %s281, 0
        $region36: #{tpu_custom_call.1} parent=27 // pred_fallthru
          _
        // Predicated region
        $region37: #{tpu_custom_call.1} parent=27 // pred_check
          %p284 = pneg %p119
        $region38: #{tpu_custom_call.1} parent=27 // pred_check_branch
          %286 = sbr.rel (%p284) target = $region40
        $region39: #{tpu_custom_call.1} parent=27 // pred_region
          %s287 = smul.u32 %s21, 8
          %s288 = sadd.s32 %s287, 8
          %p289 = scmp.lt.s32.totalorder %s288, 31
          %s290 = scalar_select %p289, %s288, 31
          %p291 = scmp.lt.s32.totalorder %s20, 1
          %s292 = scalar_select %p291, %s20, 1
          %p293 = scmp.lt.s32.totalorder %s290, 31
          %s294 = scalar_select %p293, %s290, 31
          %s295 = smul.addr %s292, 32
          %s296 = sadd.s32 %s294, %s295
          %s297 = scalar_lea.vmem %s2, %s296
          %s298 = smul.u32 %s21, 8
          %s299 = sadd.s32 %s298, 8
          %p300 = scmp.lt.s32.totalorder %s299, 31
          %s301 = scalar_select %p300, %s299, 31
        $region40: #{tpu_custom_call.1} parent=27 // pred_fallthru
          _
      $region28: #{tpu_custom_call.1} parent=5 // pred_fallthru
        _
      %p302 = scmp.le.s32.totalorder 1, %s13
      %p303 = scmp.lt.s32.totalorder %s13, 9
      %p304 = pnand %p302, %p303
      %p305 = pneg %p304
      // Predicated region
      $region41: #{tpu_custom_call.1} parent=5 // pred_check
        _
      $region42: #{tpu_custom_call.1} parent=5 // pred_check_branch
        %307 = sbr.rel (%p304) target = $region44
      $region43: #{tpu_custom_call.1} parent=5 // pred_region
        %s308 = ssub.s32 %s13, 1
        // Predicated region
        $region45: #{tpu_custom_call.1} parent=43 // pred_check
          %p309 = pneg %p146
        $region46: #{tpu_custom_call.1} parent=43 // pred_check_branch
          %311 = sbr.rel (%p309) target = $region48
        $region47: #{tpu_custom_call.1} parent=43 // pred_region
          %312 = dma.done [#allocation4], 6144
        $region48: #{tpu_custom_call.1} parent=43 // pred_fallthru
          _
        %s313 = smul.u32 8, %s23
        %p314 = scmp.lt.s32.totalorder %s22, 1
        %s315 = scalar_select %p314, %s22, 1
        %p316 = scmp.lt.s32.totalorder %s313, 31
        %s317 = scalar_select %p316, %s313, 31
        %s318 = smul.addr %s315, 32
        %s319 = sadd.s32 %s317, %s318
        %s320 = scalar_lea.vmem %s0, %s319
        %p321 = pneg %p53
        %p322 = pneg %p50
        %s323 = smul.u32 %s23, 8
        %s324 = ssub.s32 %s323, 1
        %p325 = scmp.gt.s32.totalorder %s324, 0
        %s326 = scalar_select %p325, %s324, 0
        %p327 = scmp.lt.s32.totalorder %s22, 1
        %s328 = scalar_select %p327, %s22, 1
        %p329 = scmp.lt.s32.totalorder %s326, 31
        %s330 = scalar_select %p329, %s326, 31
        %s331 = smul.addr %s328, 32
        %s332 = sadd.s32 %s330, %s331
        %s333 = scalar_lea.vmem %s1, %s332
        %p334 = pneg %p89
        %p335 = pneg %p86
        %s336 = smul.u32 %s23, 8
        %s337 = sadd.s32 %s336, 8
        %p338 = scmp.lt.s32.totalorder %s337, 31
        %s339 = scalar_select %p338, %s337, 31
        %p340 = scmp.lt.s32.totalorder %s22, 1
        %s341 = scalar_select %p340, %s22, 1
        %p342 = scmp.lt.s32.totalorder %s339, 31
        %s343 = scalar_select %p342, %s339, 31
        %s344 = smul.addr %s341, 32
        %s345 = sadd.s32 %s343, %s344
        %s346 = scalar_lea.vmem %s2, %s345
        %p347 = pneg %p125
        %p348 = pneg %p122
        %p349 = pneg %p146
        %p350 = pneg %p143
        %p351 = pneg %p167
        %p352 = pneg %p164
        %p353 = pneg %p188
        %p354 = pneg %p185
        %p355 = pneg %p216
        %p356 = pneg %p213
        %s357 = smul.u32 8, %s23
        %p358 = scmp.lt.s32.totalorder %s22, 1
        %s359 = scalar_select %p358, %s22, 1
        %p360 = scmp.lt.s32.totalorder %s357, 31
        %s361 = scalar_select %p360, %s357, 31
        %s362 = smul.addr %s359, 32
        %s363 = sadd.s32 %s361, %s362
        %s364 = scalar_lea.vmem %s6, %s363
        %s365 = smul.u32 8, %s23
        %p366 = scmp.lt.s32.totalorder %s22, 1
        %s367 = scalar_select %p366, %s22, 1
        %p368 = scmp.lt.s32.totalorder %s365, 31
        %s369 = scalar_select %p368, %s365, 31
        %s370 = smul.addr %s367, 32
        %s371 = sadd.s32 %s369, %s370
        %s372 = scalar_lea.vmem %s0, %s371
        %s373 = smul.u32 8, %s23
        %s374 = smul.u32 %s23, 8
        %s375 = ssub.s32 %s374, 1
        %p376 = scmp.gt.s32.totalorder %s375, 0
        %s377 = scalar_select %p376, %s375, 0
        %p378 = scmp.lt.s32.totalorder %s22, 1
        %s379 = scalar_select %p378, %s22, 1
        %p380 = scmp.lt.s32.totalorder %s377, 31
        %s381 = scalar_select %p380, %s377, 31
        %s382 = smul.addr %s379, 32
        %s383 = sadd.s32 %s381, %s382
        %s384 = scalar_lea.vmem %s1, %s383
        %s385 = smul.u32 %s23, 8
        %s386 = ssub.s32 %s385, 1
        %p387 = scmp.gt.s32.totalorder %s386, 0
        %s388 = scalar_select %p387, %s386, 0
        %s389 = smul.u32 %s23, 8
        %s390 = sadd.s32 %s389, 8
        %p391 = scmp.lt.s32.totalorder %s390, 31
        %s392 = scalar_select %p391, %s390, 31
        %p393 = scmp.lt.s32.totalorder %s22, 1
        %s394 = scalar_select %p393, %s22, 1
        %p395 = scmp.lt.s32.totalorder %s392, 31
        %s396 = scalar_select %p395, %s392, 31
        %s397 = smul.addr %s394, 32
        %s398 = sadd.s32 %s396, %s397
        %s399 = scalar_lea.vmem %s2, %s398
        %s400 = smul.u32 %s23, 8
        %s401 = sadd.s32 %s400, 8
        %p402 = scmp.lt.s32.totalorder %s401, 31
        %s403 = scalar_select %p402, %s401, 31
        %s404 = smul.u32 8, %s23
        %p405 = scmp.lt.s32.totalorder %s22, 1
        %s406 = scalar_select %p405, %s22, 1
        %p407 = scmp.lt.s32.totalorder %s404, 31
        %s408 = scalar_select %p407, %s404, 31
        %s409 = smul.addr %s406, 32
        %s410 = sadd.s32 %s408, %s409
        %s411 = scalar_lea.vmem %s6, %s410
        %s412 = smul.u32 8, %s23
        %v414 = vld [vmem:[%s372] sm:$0x1]
        %v415 = vld [vmem:[%s372 + $0x1] sm:$0x1]
        %v416 = vld [vmem:[%s372 + $0x2] sm:$0x1]
        %v417 = vld [vmem:[%s372 + $0x3] sm:$0x1]
        %v418 = vld [vmem:[%s372 + $0x4] sm:$0x1]
        %v419 = vld [vmem:[%s372 + $0x5] sm:$0x1]
        %v420 = vld [vmem:[%s372 + $0x6] sm:$0x1]
        %v421 = vld [vmem:[%s372 + $0x7] sm:$0x1]
        %v431 = vunpack.c.l.s4 1935823168
        %v432 = vunpack.c.0.s8 %v431
        %v433 = vlaneseq
        %v434 = vshrl.u32 %v433, 7
        %v435 = vsub.s32 %v432, %v434
        %v436 = vrot.slane %v414, %v435
        %v438 = vunpack.c.l.s4 1935823168
        %v439 = vunpack.c.0.s8 %v438
        %v440 = vlaneseq
        %v441 = vshrl.u32 %v440, 7
        %v442 = vsub.s32 %v439, %v441
        %v443 = vrot.slane %v436, %v442
        %v445 = vunpack.c.l.s4 1935823168
        %v446 = vunpack.c.0.s8 %v445
        %v447 = vlaneseq
        %v448 = vshrl.u32 %v447, 7
        %v449 = vsub.s32 %v446, %v448
        %v450 = vrot.slane %v415, %v449
        %v452 = vunpack.c.l.s4 1935823168
        %v453 = vunpack.c.0.s8 %v452
        %v454 = vlaneseq
        %v455 = vshrl.u32 %v454, 7
        %v456 = vsub.s32 %v453, %v455
        %v457 = vrot.slane %v450, %v456
        %v459 = vunpack.c.l.s4 1935823168
        %v460 = vunpack.c.0.s8 %v459
        %v461 = vlaneseq
        %v462 = vshrl.u32 %v461, 7
        %v463 = vsub.s32 %v460, %v462
        %v464 = vrot.slane %v416, %v463
        %v466 = vunpack.c.l.s4 1935823168
        %v467 = vunpack.c.0.s8 %v466
        %v468 = vlaneseq
        %v469 = vshrl.u32 %v468, 7
        %v470 = vsub.s32 %v467, %v469
        %v471 = vrot.slane %v464, %v470
        %v473 = vunpack.c.l.s4 1935823168
        %v474 = vunpack.c.0.s8 %v473
        %v475 = vlaneseq
        %v476 = vshrl.u32 %v475, 7
        %v477 = vsub.s32 %v474, %v476
        %v478 = vrot.slane %v417, %v477
        %v480 = vunpack.c.l.s4 1935823168
        %v481 = vunpack.c.0.s8 %v480
        %v482 = vlaneseq
        %v483 = vshrl.u32 %v482, 7
        %v484 = vsub.s32 %v481, %v483
        %v485 = vrot.slane %v478, %v484
        %v487 = vunpack.c.l.s4 1935823168
        %v488 = vunpack.c.0.s8 %v487
        %v489 = vlaneseq
        %v490 = vshrl.u32 %v489, 7
        %v491 = vsub.s32 %v488, %v490
        %v492 = vrot.slane %v418, %v491
        %v494 = vunpack.c.l.s4 1935823168
        %v495 = vunpack.c.0.s8 %v494
        %v496 = vlaneseq
        %v497 = vshrl.u32 %v496, 7
        %v498 = vsub.s32 %v495, %v497
        %v499 = vrot.slane %v492, %v498
        %v501 = vunpack.c.l.s4 1935823168
        %v502 = vunpack.c.0.s8 %v501
        %v503 = vlaneseq
        %v504 = vshrl.u32 %v503, 7
        %v505 = vsub.s32 %v502, %v504
        %v506 = vrot.slane %v419, %v505
        %v508 = vunpack.c.l.s4 1935823168
        %v509 = vunpack.c.0.s8 %v508
        %v510 = vlaneseq
        %v511 = vshrl.u32 %v510, 7
        %v512 = vsub.s32 %v509, %v511
        %v513 = vrot.slane %v506, %v512
        %v515 = vunpack.c.l.s4 1935823168
        %v516 = vunpack.c.0.s8 %v515
        %v517 = vlaneseq
        %v518 = vshrl.u32 %v517, 7
        %v519 = vsub.s32 %v516, %v518
        %v520 = vrot.slane %v420, %v519
        %v522 = vunpack.c.l.s4 1935823168
        %v523 = vunpack.c.0.s8 %v522
        %v524 = vlaneseq
        %v525 = vshrl.u32 %v524, 7
        %v526 = vsub.s32 %v523, %v525
        %v527 = vrot.slane %v520, %v526
        %v529 = vunpack.c.l.s4 1935823168
        %v530 = vunpack.c.0.s8 %v529
        %v531 = vlaneseq
        %v532 = vshrl.u32 %v531, 7
        %v533 = vsub.s32 %v530, %v532
        %v534 = vrot.slane %v421, %v533
        %v536 = vunpack.c.l.s4 1935823168
        %v537 = vunpack.c.0.s8 %v536
        %v538 = vlaneseq
        %v539 = vshrl.u32 %v538, 7
        %v540 = vsub.s32 %v537, %v539
        %v541 = vrot.slane %v534, %v540
        %v542 = vunpack.c.l.b16 %v443
        %v543 = vunpack.c.l.b16 %v457
        %v544 = vunpack.c.l.b16 %v471
        %v545 = vunpack.c.l.b16 %v485
        %v546 = vunpack.c.l.b16 %v499
        %v547 = vunpack.c.l.b16 %v513
        %v548 = vunpack.c.l.b16 %v527
        %v549 = vunpack.c.l.b16 %v541
        %v550 = vrot.slane %v542, 7
        %v551 = vrot.slane %v543, 6
        %vm552 = vcmask 1042434
        %v553 = vsel %vm552, %v551, %v550
        %v554 = vrot.slane %v544, 5
        %vm555 = vcmask 1043459
        %v556 = vsel %vm555, %v554, %v553
        %v557 = vrot.slane %v545, 4
        %vm558 = vcmask 1044484
        %v559 = vsel %vm558, %v557, %v556
        %v560 = vrot.slane %v546, 3
        %vm561 = vcmask 1045509
        %v562 = vsel %vm561, %v560, %v559
        %v563 = vrot.slane %v547, 2
        %vm564 = vcmask 1046534
        %v565 = vsel %vm564, %v563, %v562
        %v566 = vrot.slane %v548, 1
        %vm567 = vcmask 1047559
        %v568 = vsel %vm567, %v566, %v565
        %v569 = vpack.c.b16 %v568, %v568
        %v570 = vpack.c.b16 %v549, %v549
        %vm573 = vcmask 1043456
        %vm574 = vsmask.f32 7938
        %vm575 = vmand %vm573, %vm574
        %v576 = vld [vmem:[#allocation2] sm:$0xf]
        %v577 = vsel %vm575, %v569, %v576
        %578 = vst [vmem:[#allocation2] sm:$0xf] %v577
        %vm579 = vcmask 1040384
        %vm580 = vsmask.f32 256
        %vm581 = vmand %vm579, %vm580
        %v582 = vld [vmem:[#allocation2 + $0x4] sm:$0x1]
        %v583 = vsel %vm581, %v570, %v582
        %584 = vst [vmem:[#allocation2 + $0x4] sm:$0x1] %v583
        %p585 = scmp.gt.s32.totalorder %s23, 0
        // Predicated region
        $region49: #{tpu_custom_call.1} parent=43 // pred_check
          %p586 = pneg %p585
        $region50: #{tpu_custom_call.1} parent=43 // pred_check_branch
          %588 = sbr.rel (%p586) target = $region52
        $region51: #{tpu_custom_call.1} parent=43 // pred_region
          %v589 = vld [vmem:[%s384] sm:$0x1]
          %v590 = vld [vmem:[#allocation2] sm:$0x1]
          %v591 = vsel %vm581, %v589, %v590
          %592 = vst [vmem:[#allocation2] sm:$0x1] %v591
        $region52: #{tpu_custom_call.1} parent=43 // pred_fallthru
          _
        %p593 = scmp.eq.s32.totalorder %s23, 0
        // Predicated region
        $region53: #{tpu_custom_call.1} parent=43 // pred_check
          %p594 = pneg %p593
        $region54: #{tpu_custom_call.1} parent=43 // pred_check_branch
          %596 = sbr.rel (%p594) target = $region56
        $region55: #{tpu_custom_call.1} parent=43 // pred_region
          %v597 = vld [vmem:[#allocation2] sm:$0x1]
          %v598 = vsel %vm581, 0, %v597
          %599 = vst [vmem:[#allocation2] sm:$0x1] %v598
        $region56: #{tpu_custom_call.1} parent=43 // pred_fallthru
          _
        %p600 = scmp.lt.s32.totalorder %s23, 3
        // Predicated region
        $region57: #{tpu_custom_call.1} parent=43 // pred_check
          %p601 = pneg %p600
        $region58: #{tpu_custom_call.1} parent=43 // pred_check_branch
          %603 = sbr.rel (%p601) target = $region60
        $region59: #{tpu_custom_call.1} parent=43 // pred_region
          %v604 = vld [vmem:[%s399] sm:$0x1]
          %v607 = vunpack.c.l.s4 1935823168
          %v608 = vunpack.c.0.s8 %v607
          %v609 = vlaneseq
          %v610 = vshrl.u32 %v609, 7
          %v611 = vsub.s32 %v608, %v610
          %v612 = vrot.slane %v604, %v611
          %v614 = vunpack.c.l.s4 1935823168
          %v615 = vunpack.c.0.s8 %v614
          %v616 = vlaneseq
          %v617 = vshrl.u32 %v616, 7
          %v618 = vsub.s32 %v615, %v617
          %v619 = vrot.slane %v612, %v618
          %v621 = vshll.u32 %v619, 16
          %vm624 = vmand %vm579, %vm574
          %v625 = vld [vmem:[#allocation2 + $0x4] sm:$0x1]
          %v626 = vsel %vm624, %v621, %v625
          %627 = vst [vmem:[#allocation2 + $0x4] sm:$0x1] %v626
        $region60: #{tpu_custom_call.1} parent=43 // pred_fallthru
          _
        %p628 = scmp.eq.s32.totalorder %s23, 3
        // Predicated region
        $region61: #{tpu_custom_call.1} parent=43 // pred_check
          %p629 = pneg %p628
        $region62: #{tpu_custom_call.1} parent=43 // pred_check_branch
          %631 = sbr.rel (%p629) target = $region64
        $region63: #{tpu_custom_call.1} parent=43 // pred_region
          %vm632 = vmand %vm579, %vm574
          %v633 = vld [vmem:[#allocation2 + $0x4] sm:$0x1]
          %v634 = vsel %vm632, 0, %v633
          %635 = vst [vmem:[#allocation2 + $0x4] sm:$0x1] %v634
        $region64: #{tpu_custom_call.1} parent=43 // pred_fallthru
          _
        %v636 = vld [vmem:[#allocation2] sm:$0xf]
        %v637 = vld [vmem:[#allocation3] sm:$0xff]
        %v638 = vld [vmem:[#allocation3 + $0x8] sm:$0xff]
        %v639 = vld [vmem:[#allocation3 + $0x10] sm:$0xff]
        %v640 = vld [vmem:[#allocation3 + $0x18] sm:$0xff]
        %v641 = vld [vmem:[#allocation3 + $0x20] sm:$0xff]
        %v642 = vld [vmem:[#allocation3 + $0x28] sm:$0xff]
        %v643 = vld [vmem:[#allocation3 + $0x30] sm:$0xff]
        %v644 = vld [vmem:[#allocation3 + $0x38] sm:$0xff]
        %v645 = vld [vmem:[#allocation3 + $0x40] sm:$0xff]
        %v646 = vld [vmem:[#allocation3 + $0x48] sm:$0xff]
        %v647 = vld [vmem:[#allocation3 + $0x50] sm:$0xff]
        %v648 = vld [vmem:[#allocation3 + $0x58] sm:$0xff]
        %v649 = vld [vmem:[#allocation3 + $0x60] sm:$0xff]
        %v650 = vld [vmem:[#allocation3 + $0x68] sm:$0xff]
        %v651 = vld [vmem:[#allocation3 + $0x70] sm:$0xff]
        %v652 = vld [vmem:[#allocation3 + $0x78] sm:$0xff]
        %v653 = vld [vmem:[#allocation2 + $0x4] sm:$0x1]
        %s654 = scalar_lea.vmem [#allocation3], 128
        %v655 = vld [vmem:[%s654] sm:$0xff]
        %v656 = vld [vmem:[%s654 + $0x8] sm:$0xff]
        %v657 = vld [vmem:[%s654 + $0x10] sm:$0xff]
        %v658 = vld [vmem:[%s654 + $0x18] sm:$0xff]
        %v659 = vld [vmem:[%s654 + $0x20] sm:$0xff]
        %v660 = vld [vmem:[%s654 + $0x28] sm:$0xff]
        %v661 = vld [vmem:[%s654 + $0x30] sm:$0xff]
        %v662 = vld [vmem:[%s654 + $0x38] sm:$0xff]
        %v663 = vld [vmem:[%s654 + $0x40] sm:$0xff]
        %v664 = vld [vmem:[%s654 + $0x48] sm:$0xff]
        %v665 = vld [vmem:[%s654 + $0x50] sm:$0xff]
        %v666 = vld [vmem:[%s654 + $0x58] sm:$0xff]
        %v667 = vld [vmem:[%s654 + $0x60] sm:$0xff]
        %v668 = vld [vmem:[%s654 + $0x68] sm:$0xff]
        %v669 = vld [vmem:[%s654 + $0x70] sm:$0xff]
        %v670 = vld [vmem:[%s654 + $0x78] sm:$0xff]
        %v673 = vunpack.c.l.b16 %v636
        %v674 = vunpack.c.l.b16 %v653
        %v675 = vpack.c.b16 %v674, %v673
        %v677 = vshrl.u32 %v675, 16
        %v679 = vshll.u32 %v675, 16
        %v681 = vrot.slane %v679, 1
        %v682 = vor.u32 %v677, %v681
        %v700 = vunpack.c.l.b16 %v655
        %v701 = vunpack.c.h.b16 %v655
        %v702 = vunpack.c.l.b16 %v656
        %v703 = vunpack.c.h.b16 %v656
        %v704 = vunpack.c.l.b16 %v657
        %v705 = vunpack.c.h.b16 %v657
        %v706 = vunpack.c.l.b16 %v658
        %v707 = vunpack.c.h.b16 %v658
        %v708 = vunpack.c.l.b16 %v659
        %v709 = vunpack.c.h.b16 %v659
        %v710 = vunpack.c.l.b16 %v660
        %v711 = vunpack.c.h.b16 %v660
        %v712 = vunpack.c.l.b16 %v661
        %v713 = vunpack.c.h.b16 %v661
        %v714 = vunpack.c.l.b16 %v662
        %v715 = vunpack.c.h.b16 %v662
        %v716 = vunpack.c.l.b16 %v663
        %v717 = vunpack.c.h.b16 %v663
        %v718 = vunpack.c.l.b16 %v664
        %v719 = vunpack.c.h.b16 %v664
        %v720 = vunpack.c.l.b16 %v665
        %v721 = vunpack.c.h.b16 %v665
        %v722 = vunpack.c.l.b16 %v666
        %v723 = vunpack.c.h.b16 %v666
        %v724 = vunpack.c.l.b16 %v667
        %v725 = vunpack.c.h.b16 %v667
        %v726 = vunpack.c.l.b16 %v668
        %v727 = vunpack.c.h.b16 %v668
        %v728 = vunpack.c.l.b16 %v669
        %v729 = vunpack.c.h.b16 %v669
        %v730 = vunpack.c.l.b16 %v670
        %v731 = vunpack.c.h.b16 %v670
        %v732 = vpack.c.b16 %v702, %v700
        %v733 = vpack.c.b16 %v703, %v701
        %v734 = vpack.c.b16 %v706, %v704
        %v735 = vpack.c.b16 %v707, %v705
        %v736 = vpack.c.b16 %v710, %v708
        %v737 = vpack.c.b16 %v711, %v709
        %v738 = vpack.c.b16 %v714, %v712
        %v739 = vpack.c.b16 %v715, %v713
        %v740 = vpack.c.b16 %v718, %v716
        %v741 = vpack.c.b16 %v719, %v717
        %v742 = vpack.c.b16 %v722, %v720
        %v743 = vpack.c.b16 %v723, %v721
        %v744 = vpack.c.b16 %v726, %v724
        %v745 = vpack.c.b16 %v727, %v725
        %v746 = vpack.c.b16 %v730, %v728
        %v747 = vpack.c.b16 %v731, %v729
        %764 = vmatprep.subr.bf16.mxu0 %v733
        %765 = vmatpush1.bf16.msra.mxu0 %v732
        %766 = vmatprep.subr.bf16.mxu0 %v735
        %767 = vmatpush1.bf16.msra.mxu0 %v734
        %768 = vmatprep.subr.bf16.mxu0 %v737
        %769 = vmatpush1.bf16.msra.mxu0 %v736
        %770 = vmatprep.subr.bf16.mxu0 %v739
        %771 = vmatpush1.bf16.msra.mxu0 %v738
        %772 = vmatprep.subr.bf16.mxu0 %v741
        %773 = vmatpush1.bf16.msra.mxu0 %v740
        %774 = vmatprep.subr.bf16.mxu0 %v743
        %775 = vmatpush1.bf16.msra.mxu0 %v742
        %776 = vmatprep.subr.bf16.mxu0 %v745
        %777 = vmatpush1.bf16.msra.mxu0 %v744
        %778 = vmatprep.subr.bf16.mxu0 %v747
        %779 = vmatpush1.bf16.msra.mxu0 %v746
        %780 = vmatprep.subr.bf16.mxu0 0
        %781 = vmatpush1.bf16.msra.mxu0 0
        %782 = vmatprep.subr.bf16.mxu0 0
        %783 = vmatpush1.bf16.msra.mxu0 0
        %784 = vmatprep.subr.bf16.mxu0 0
        %785 = vmatpush1.bf16.msra.mxu0 0
        %786 = vmatprep.subr.bf16.mxu0 0
        %787 = vmatpush1.bf16.msra.mxu0 0
        %788 = vmatprep.subr.bf16.mxu0 0
        %789 = vmatpush1.bf16.msra.mxu0 0
        %790 = vmatprep.subr.bf16.mxu0 0
        %791 = vmatpush1.bf16.msra.mxu0 0
        %792 = vmatprep.subr.bf16.mxu0 0
        %793 = vmatpush1.bf16.msra.mxu0 0
        %794 = vmatprep.subr.bf16.mxu0 0
        %795 = vmatpush1.bf16.msra.mxu0 0
        %796 = vmatprep.mubr.bf16.mxu0 0
        %797 = vmatmul.mubr.bf16.gmra.mrb[0].mxu0 %v682
        %v798 = vpop.f32.mrb[0].mxu0
        %v799 = vadd.f32 0.0, %v798
        %v800 = vpop.f32.mrb[0].mxu0
        %v801 = vadd.f32 0.0, %v800
        %v802 = vpop.f32.mrb[0].mxu0
        %v803 = vpop.f32.mrb[0].mxu0
        %804 = vdwg.mxu0
        %v821 = vunpack.c.l.b16 %v637
        %v822 = vunpack.c.h.b16 %v637
        %v823 = vunpack.c.l.b16 %v638
        %v824 = vunpack.c.h.b16 %v638
        %v825 = vunpack.c.l.b16 %v639
        %v826 = vunpack.c.h.b16 %v639
        %v827 = vunpack.c.l.b16 %v640
        %v828 = vunpack.c.h.b16 %v640
        %v829 = vunpack.c.l.b16 %v641
        %v830 = vunpack.c.h.b16 %v641
        %v831 = vunpack.c.l.b16 %v642
        %v832 = vunpack.c.h.b16 %v642
        %v833 = vunpack.c.l.b16 %v643
        %v834 = vunpack.c.h.b16 %v643
        %v835 = vunpack.c.l.b16 %v644
        %v836 = vunpack.c.h.b16 %v644
        %v837 = vunpack.c.l.b16 %v645
        %v838 = vunpack.c.h.b16 %v645
        %v839 = vunpack.c.l.b16 %v646
        %v840 = vunpack.c.h.b16 %v646
        %v841 = vunpack.c.l.b16 %v647
        %v842 = vunpack.c.h.b16 %v647
        %v843 = vunpack.c.l.b16 %v648
        %v844 = vunpack.c.h.b16 %v648
        %v845 = vunpack.c.l.b16 %v649
        %v846 = vunpack.c.h.b16 %v649
        %v847 = vunpack.c.l.b16 %v650
        %v848 = vunpack.c.h.b16 %v650
        %v849 = vunpack.c.l.b16 %v651
        %v850 = vunpack.c.h.b16 %v651
        %v851 = vunpack.c.l.b16 %v652
        %v852 = vunpack.c.h.b16 %v652
        %v853 = vpack.c.b16 %v823, %v821
        %v854 = vpack.c.b16 %v824, %v822
        %v855 = vpack.c.b16 %v827, %v825
        %v856 = vpack.c.b16 %v828, %v826
        %v857 = vpack.c.b16 %v831, %v829
        %v858 = vpack.c.b16 %v832, %v830
        %v859 = vpack.c.b16 %v835, %v833
        %v860 = vpack.c.b16 %v836, %v834
        %v861 = vpack.c.b16 %v839, %v837
        %v862 = vpack.c.b16 %v840, %v838
        %v863 = vpack.c.b16 %v843, %v841
        %v864 = vpack.c.b16 %v844, %v842
        %v865 = vpack.c.b16 %v847, %v845
        %v866 = vpack.c.b16 %v848, %v846
        %v867 = vpack.c.b16 %v851, %v849
        %v868 = vpack.c.b16 %v852, %v850
        %885 = vmatprep.subr.bf16.mxu0 %v854
        %886 = vmatpush1.bf16.msra.mxu0 %v853
        %887 = vmatprep.subr.bf16.mxu0 %v856
        %888 = vmatpush1.bf16.msra.mxu0 %v855
        %889 = vmatprep.subr.bf16.mxu0 %v858
        %890 = vmatpush1.bf16.msra.mxu0 %v857
        %891 = vmatprep.subr.bf16.mxu0 %v860
        %892 = vmatpush1.bf16.msra.mxu0 %v859
        %893 = vmatprep.subr.bf16.mxu0 %v862
        %894 = vmatpush1.bf16.msra.mxu0 %v861
        %895 = vmatprep.subr.bf16.mxu0 %v864
        %896 = vmatpush1.bf16.msra.mxu0 %v863
        %897 = vmatprep.subr.bf16.mxu0 %v866
        %898 = vmatpush1.bf16.msra.mxu0 %v865
        %899 = vmatprep.subr.bf16.mxu0 %v868
        %900 = vmatpush1.bf16.msra.mxu0 %v867
        %901 = vmatprep.subr.bf16.mxu0 0
        %902 = vmatpush1.bf16.msra.mxu0 0
        %903 = vmatprep.subr.bf16.mxu0 0
        %904 = vmatpush1.bf16.msra.mxu0 0
        %905 = vmatprep.subr.bf16.mxu0 0
        %906 = vmatpush1.bf16.msra.mxu0 0
        %907 = vmatprep.subr.bf16.mxu0 0
        %908 = vmatpush1.bf16.msra.mxu0 0
        %909 = vmatprep.subr.bf16.mxu0 0
        %910 = vmatpush1.bf16.msra.mxu0 0
        %911 = vmatprep.subr.bf16.mxu0 0
        %912 = vmatpush1.bf16.msra.mxu0 0
        %913 = vmatprep.subr.bf16.mxu0 0
        %914 = vmatpush1.bf16.msra.mxu0 0
        %915 = vmatprep.subr.bf16.mxu0 0
        %916 = vmatpush1.bf16.msra.mxu0 0
        %917 = vmatprep.mubr.bf16.mxu0 0
        %918 = vmatmul.mubr.bf16.gmra.mrb[0].mxu0 %v636
        %v919 = vpop.f32.mrb[0].mxu0
        %v920 = vadd.f32 %v799, %v919
        %v921 = vpop.f32.mrb[0].mxu0
        %v922 = vadd.f32 %v801, %v921
        %v923 = vpop.f32.mrb[0].mxu0
        %v924 = vpop.f32.mrb[0].mxu0
        %925 = vdwg.mxu0
        %v926 = vld [vmem:[#allocation2] sm:$0xe]
        %s927 = scalar_lea.vmem [#allocation3], 256
        %v928 = vld [vmem:[%s927] sm:$0xff]
        %v929 = vld [vmem:[%s927 + $0x8] sm:$0xff]
        %v930 = vld [vmem:[%s927 + $0x10] sm:$0xff]
        %v931 = vld [vmem:[%s927 + $0x18] sm:$0xff]
        %v932 = vld [vmem:[%s927 + $0x20] sm:$0xff]
        %v933 = vld [vmem:[%s927 + $0x28] sm:$0xff]
        %v934 = vld [vmem:[%s927 + $0x30] sm:$0xff]
        %v935 = vld [vmem:[%s927 + $0x38] sm:$0xff]
        %v936 = vld [vmem:[%s927 + $0x40] sm:$0xff]
        %v937 = vld [vmem:[%s927 + $0x48] sm:$0xff]
        %v938 = vld [vmem:[%s927 + $0x50] sm:$0xff]
        %v939 = vld [vmem:[%s927 + $0x58] sm:$0xff]
        %v940 = vld [vmem:[%s927 + $0x60] sm:$0xff]
        %v941 = vld [vmem:[%s927 + $0x68] sm:$0xff]
        %v942 = vld [vmem:[%s927 + $0x70] sm:$0xff]
        %v943 = vld [vmem:[%s927 + $0x78] sm:$0xff]
        %v945 = vunpack.c.l.b16 %v926
        %v946 = vpack.c.b16 %v674, %v945
        %v947 = vrot.slane %v946, 1
        %v965 = vunpack.c.l.b16 %v928
        %v966 = vunpack.c.h.b16 %v928
        %v967 = vunpack.c.l.b16 %v929
        %v968 = vunpack.c.h.b16 %v929
        %v969 = vunpack.c.l.b16 %v930
        %v970 = vunpack.c.h.b16 %v930
        %v971 = vunpack.c.l.b16 %v931
        %v972 = vunpack.c.h.b16 %v931
        %v973 = vunpack.c.l.b16 %v932
        %v974 = vunpack.c.h.b16 %v932
        %v975 = vunpack.c.l.b16 %v933
        %v976 = vunpack.c.h.b16 %v933
        %v977 = vunpack.c.l.b16 %v934
        %v978 = vunpack.c.h.b16 %v934
        %v979 = vunpack.c.l.b16 %v935
        %v980 = vunpack.c.h.b16 %v935
        %v981 = vunpack.c.l.b16 %v936
        %v982 = vunpack.c.h.b16 %v936
        %v983 = vunpack.c.l.b16 %v937
        %v984 = vunpack.c.h.b16 %v937
        %v985 = vunpack.c.l.b16 %v938
        %v986 = vunpack.c.h.b16 %v938
        %v987 = vunpack.c.l.b16 %v939
        %v988 = vunpack.c.h.b16 %v939
        %v989 = vunpack.c.l.b16 %v940
        %v990 = vunpack.c.h.b16 %v940
        %v991 = vunpack.c.l.b16 %v941
        %v992 = vunpack.c.h.b16 %v941
        %v993 = vunpack.c.l.b16 %v942
        %v994 = vunpack.c.h.b16 %v942
        %v995 = vunpack.c.l.b16 %v943
        %v996 = vunpack.c.h.b16 %v943
        %v997 = vpack.c.b16 %v967, %v965
        %v998 = vpack.c.b16 %v968, %v966
        %v999 = vpack.c.b16 %v971, %v969
        %v1000 = vpack.c.b16 %v972, %v970
        %v1001 = vpack.c.b16 %v975, %v973
        %v1002 = vpack.c.b16 %v976, %v974
        %v1003 = vpack.c.b16 %v979, %v977
        %v1004 = vpack.c.b16 %v980, %v978
        %v1005 = vpack.c.b16 %v983, %v981
        %v1006 = vpack.c.b16 %v984, %v982
        %v1007 = vpack.c.b16 %v987, %v985
        %v1008 = vpack.c.b16 %v988, %v986
        %v1009 = vpack.c.b16 %v991, %v989
        %v1010 = vpack.c.b16 %v992, %v990
        %v1011 = vpack.c.b16 %v995, %v993
        %v1012 = vpack.c.b16 %v996, %v994
        %1029 = vmatprep.subr.bf16.mxu0 %v998
        %1030 = vmatpush1.bf16.msra.mxu0 %v997
        %1031 = vmatprep.subr.bf16.mxu0 %v1000
        %1032 = vmatpush1.bf16.msra.mxu0 %v999
        %1033 = vmatprep.subr.bf16.mxu0 %v1002
        %1034 = vmatpush1.bf16.msra.mxu0 %v1001
        %1035 = vmatprep.subr.bf16.mxu0 %v1004
        %1036 = vmatpush1.bf16.msra.mxu0 %v1003
        %1037 = vmatprep.subr.bf16.mxu0 %v1006
        %1038 = vmatpush1.bf16.msra.mxu0 %v1005
        %1039 = vmatprep.subr.bf16.mxu0 %v1008
        %1040 = vmatpush1.bf16.msra.mxu0 %v1007
        %1041 = vmatprep.subr.bf16.mxu0 %v1010
        %1042 = vmatpush1.bf16.msra.mxu0 %v1009
        %1043 = vmatprep.subr.bf16.mxu0 %v1012
        %1044 = vmatpush1.bf16.msra.mxu0 %v1011
        %1045 = vmatprep.subr.bf16.mxu0 0
        %1046 = vmatpush1.bf16.msra.mxu0 0
        %1047 = vmatprep.subr.bf16.mxu0 0
        %1048 = vmatpush1.bf16.msra.mxu0 0
        %1049 = vmatprep.subr.bf16.mxu0 0
        %1050 = vmatpush1.bf16.msra.mxu0 0
        %1051 = vmatprep.subr.bf16.mxu0 0
        %1052 = vmatpush1.bf16.msra.mxu0 0
        %1053 = vmatprep.subr.bf16.mxu0 0
        %1054 = vmatpush1.bf16.msra.mxu0 0
        %1055 = vmatprep.subr.bf16.mxu0 0
        %1056 = vmatpush1.bf16.msra.mxu0 0
        %1057 = vmatprep.subr.bf16.mxu0 0
        %1058 = vmatpush1.bf16.msra.mxu0 0
        %1059 = vmatprep.subr.bf16.mxu0 0
        %1060 = vmatpush1.bf16.msra.mxu0 0
        %1061 = vmatprep.mubr.bf16.mxu0 0
        %1062 = vmatmul.mubr.bf16.gmra.mrb[0].mxu0 %v947
        %v1063 = vpop.f32.mrb[0].mxu0
        %v1064 = vadd.f32 0.0, %v1063
        %v1065 = vpop.f32.mrb[0].mxu0
        %v1066 = vadd.f32 0.0, %v1065
        %v1067 = vpop.f32.mrb[0].mxu0
        %v1068 = vpop.f32.mrb[0].mxu0
        %1069 = vdwg.mxu0
        %v1070 = vadd.f32 %v920, %v1064
        %v1071 = vadd.f32 %v922, %v1066
        %v1072 = vld [vmem:[%s4] sm:$0x3]
        %v1074 = vlaneseq
        %v1075 = vshrl.u32 %v1074, 7
        %v1076 = vsub.s32 0, %v1075
        %v1077 = vrot.slane %v1072, %v1076
        %v1078 = vlaneseq
        %v1079 = vshrl.u32 %v1078, 7
        %v1080 = vsub.s32 1, %v1079
        %v1081 = vrot.slane %v1072, %v1080
        %v1084 = vadd.f32 %v1070, %v1077
        %v1085 = vadd.f32 %v1071, %v1081
        %v1086 = vmax.f32 %v1084, 0.0
        %v1087 = vmax.f32 %v1085, 0.0
        %v1088 = vpack.c.bf16 %v1086, %v1086
        %v1089 = vpack.c.bf16 %v1087, %v1087
        %v1090 = vld [vmem:[%s5] sm:$0xf]
        %v1091 = vld [vmem:[%s5 + $0x4] sm:$0xf]
        %v1092 = vld [vmem:[%s5 + $0x8] sm:$0xf]
        %v1093 = vld [vmem:[%s5 + $0xc] sm:$0xf]
        %v1094 = vld [vmem:[%s5 + $0x10] sm:$0xf]
        %v1095 = vld [vmem:[%s5 + $0x14] sm:$0xf]
        %v1096 = vld [vmem:[%s5 + $0x18] sm:$0xf]
        %v1097 = vld [vmem:[%s5 + $0x1c] sm:$0xf]
        %v1098 = vld [vmem:[%s5 + $0x20] sm:$0xf]
        %v1099 = vld [vmem:[%s5 + $0x24] sm:$0xf]
        %v1100 = vld [vmem:[%s5 + $0x28] sm:$0xf]
        %v1101 = vld [vmem:[%s5 + $0x2c] sm:$0xf]
        %v1102 = vld [vmem:[%s5 + $0x30] sm:$0xf]
        %v1103 = vld [vmem:[%s5 + $0x34] sm:$0xf]
        %v1104 = vld [vmem:[%s5 + $0x38] sm:$0xf]
        %v1105 = vld [vmem:[%s5 + $0x3c] sm:$0xf]
        %v1106 = vld [vmem:[%s5 + $0x40] sm:$0xf]
        %v1107 = vld [vmem:[%s5 + $0x44] sm:$0xf]
        %v1108 = vld [vmem:[%s5 + $0x48] sm:$0xf]
        %v1109 = vld [vmem:[%s5 + $0x4c] sm:$0xf]
        %v1110 = vld [vmem:[%s5 + $0x50] sm:$0xf]
        %v1111 = vld [vmem:[%s5 + $0x54] sm:$0xf]
        %v1112 = vld [vmem:[%s5 + $0x58] sm:$0xf]
        %v1113 = vld [vmem:[%s5 + $0x5c] sm:$0xf]
        %v1114 = vld [vmem:[%s5 + $0x60] sm:$0xf]
        %v1115 = vld [vmem:[%s5 + $0x64] sm:$0xf]
        %v1116 = vld [vmem:[%s5 + $0x68] sm:$0xf]
        %v1117 = vld [vmem:[%s5 + $0x6c] sm:$0xf]
        %v1118 = vld [vmem:[%s5 + $0x70] sm:$0xf]
        %v1119 = vld [vmem:[%s5 + $0x74] sm:$0xf]
        %v1120 = vld [vmem:[%s5 + $0x78] sm:$0xf]
        %v1121 = vld [vmem:[%s5 + $0x7c] sm:$0xf]
        %v1154 = vunpack.c.l.b16 %v1090
        %v1155 = vunpack.c.l.b16 %v1091
        %v1156 = vunpack.c.l.b16 %v1092
        %v1157 = vunpack.c.l.b16 %v1093
        %v1158 = vunpack.c.l.b16 %v1094
        %v1159 = vunpack.c.l.b16 %v1095
        %v1160 = vunpack.c.l.b16 %v1096
        %v1161 = vunpack.c.l.b16 %v1097
        %v1162 = vunpack.c.l.b16 %v1098
        %v1163 = vunpack.c.l.b16 %v1099
        %v1164 = vunpack.c.l.b16 %v1100
        %v1165 = vunpack.c.l.b16 %v1101
        %v1166 = vunpack.c.l.b16 %v1102
        %v1167 = vunpack.c.l.b16 %v1103
        %v1168 = vunpack.c.l.b16 %v1104
        %v1169 = vunpack.c.l.b16 %v1105
        %v1170 = vunpack.c.l.b16 %v1106
        %v1171 = vunpack.c.l.b16 %v1107
        %v1172 = vunpack.c.l.b16 %v1108
        %v1173 = vunpack.c.l.b16 %v1109
        %v1174 = vunpack.c.l.b16 %v1110
        %v1175 = vunpack.c.l.b16 %v1111
        %v1176 = vunpack.c.l.b16 %v1112
        %v1177 = vunpack.c.l.b16 %v1113
        %v1178 = vunpack.c.l.b16 %v1114
        %v1179 = vunpack.c.l.b16 %v1115
        %v1180 = vunpack.c.l.b16 %v1116
        %v1181 = vunpack.c.l.b16 %v1117
        %v1182 = vunpack.c.l.b16 %v1118
        %v1183 = vunpack.c.l.b16 %v1119
        %v1184 = vunpack.c.l.b16 %v1120
        %v1185 = vunpack.c.l.b16 %v1121
        %v1186 = vpack.c.b16 %v1155, %v1154
        %v1187 = vpack.c.b16 %v1157, %v1156
        %v1188 = vpack.c.b16 %v1159, %v1158
        %v1189 = vpack.c.b16 %v1161, %v1160
        %v1190 = vpack.c.b16 %v1163, %v1162
        %v1191 = vpack.c.b16 %v1165, %v1164
        %v1192 = vpack.c.b16 %v1167, %v1166
        %v1193 = vpack.c.b16 %v1169, %v1168
        %v1194 = vpack.c.b16 %v1171, %v1170
        %v1195 = vpack.c.b16 %v1173, %v1172
        %v1196 = vpack.c.b16 %v1175, %v1174
        %v1197 = vpack.c.b16 %v1177, %v1176
        %v1198 = vpack.c.b16 %v1179, %v1178
        %v1199 = vpack.c.b16 %v1181, %v1180
        %v1200 = vpack.c.b16 %v1183, %v1182
        %v1201 = vpack.c.b16 %v1185, %v1184
        %1218 = vmatprep.subr.bf16.mxu0 0
        %1219 = vmatpush1.bf16.msra.mxu0 %v1186
        %1220 = vmatprep.subr.bf16.mxu0 0
        %1221 = vmatpush1.bf16.msra.mxu0 %v1187
        %1222 = vmatprep.subr.bf16.mxu0 0
        %1223 = vmatpush1.bf16.msra.mxu0 %v1188
        %1224 = vmatprep.subr.bf16.mxu0 0
        %1225 = vmatpush1.bf16.msra.mxu0 %v1189
        %1226 = vmatprep.subr.bf16.mxu0 0
        %1227 = vmatpush1.bf16.msra.mxu0 %v1190
        %1228 = vmatprep.subr.bf16.mxu0 0
        %1229 = vmatpush1.bf16.msra.mxu0 %v1191
        %1230 = vmatprep.subr.bf16.mxu0 0
        %1231 = vmatpush1.bf16.msra.mxu0 %v1192
        %1232 = vmatprep.subr.bf16.mxu0 0
        %1233 = vmatpush1.bf16.msra.mxu0 %v1193
        %1234 = vmatprep.subr.bf16.mxu0 0
        %1235 = vmatpush1.bf16.msra.mxu0 %v1194
        %1236 = vmatprep.subr.bf16.mxu0 0
        %1237 = vmatpush1.bf16.msra.mxu0 %v1195
        %1238 = vmatprep.subr.bf16.mxu0 0
        %1239 = vmatpush1.bf16.msra.mxu0 %v1196
        %1240 = vmatprep.subr.bf16.mxu0 0
        %1241 = vmatpush1.bf16.msra.mxu0 %v1197
        %1242 = vmatprep.subr.bf16.mxu0 0
        %1243 = vmatpush1.bf16.msra.mxu0 %v1198
        %1244 = vmatprep.subr.bf16.mxu0 0
        %1245 = vmatpush1.bf16.msra.mxu0 %v1199
        %1246 = vmatprep.subr.bf16.mxu0 0
        %1247 = vmatpush1.bf16.msra.mxu0 %v1200
        %1248 = vmatprep.subr.bf16.mxu0 0
        %1249 = vmatpush1.bf16.msra.mxu0 %v1201
        %1250 = vmatprep.mubr.bf16.mxu0 %v1089
        %1251 = vmatmul.mubr.bf16.gmra.mrb[0].mxu0 %v1088
        %v1252 = vpop.f32.mrb[0].mxu0
        %v1253 = vadd.f32 0.0, %v1252
        %v1254 = vpop.f32.mrb[0].mxu0
        %v1255 = vpop.f32.mrb[0].mxu0
        %v1256 = vpop.f32.mrb[0].mxu0
        %1257 = vdwg.mxu0
        %v1258 = vpack.c.bf16 %v1253, %v1253
        %v1261 = vunpack.c.l.s4 1966171168
        %v1262 = vunpack.c.0.s8 %v1261
        %v1263 = vlaneseq
        %v1264 = vshrl.u32 %v1263, 7
        %v1265 = vsub.s32 %v1262, %v1264
        %v1266 = vrot.slane %v1258, %v1265
        %v1267 = vcombine.high %v1266, %v1266
        %v1269 = vunpack.c.l.s4 1966171168
        %v1270 = vunpack.c.0.s8 %v1269
        %v1271 = vlaneseq
        %v1272 = vshrl.u32 %v1271, 7
        %v1273 = vsub.s32 %v1270, %v1272
        %v1274 = vrot.slane %v1266, %v1273
        %v1276 = vunpack.c.l.s4 1966171168
        %v1277 = vunpack.c.0.s8 %v1276
        %v1278 = vlaneseq
        %v1279 = vshrl.u32 %v1278, 7
        %v1280 = vsub.s32 %v1277, %v1279
        %v1281 = vrot.slane %v1267, %v1280
        %v1282 = vcombine.high %v1274, %v1274
        %v1283 = vcombine.high %v1281, %v1281
        %v1284 = vunpack.i.l.s16 %v1274
        %v1285 = vunpack.i.h.s16 %v1274
        %v1286 = vunpack.i.l.s16 %v1281
        %v1287 = vunpack.i.h.s16 %v1281
        %v1288 = vunpack.i.l.s16 %v1282
        %v1289 = vunpack.i.h.s16 %v1282
        %v1290 = vunpack.i.l.s16 %v1283
        %v1291 = vunpack.i.h.s16 %v1283
        %v1292 = vpack.i.b16 %v1284, %v1284
        %v1293 = vpack.i.b16 %v1285, %v1285
        %v1294 = vpack.i.b16 %v1286, %v1286
        %v1295 = vpack.i.b16 %v1287, %v1287
        %v1296 = vpack.i.b16 %v1288, %v1288
        %v1297 = vpack.i.b16 %v1289, %v1289
        %v1298 = vpack.i.b16 %v1290, %v1290
        %v1299 = vpack.i.b16 %v1291, %v1291
        %v1308 = vld [vmem:[%s411] sm:$0x1]
        %v1309 = vsel %vm581, %v1292, %v1308
        %1310 = vst [vmem:[%s411] sm:$0x1] %v1309
        %v1311 = vld [vmem:[%s411 + $0x1] sm:$0x1]
        %v1312 = vsel %vm581, %v1293, %v1311
        %1313 = vst [vmem:[%s411 + $0x1] sm:$0x1] %v1312
        %v1314 = vld [vmem:[%s411 + $0x2] sm:$0x1]
        %v1315 = vsel %vm581, %v1294, %v1314
        %1316 = vst [vmem:[%s411 + $0x2] sm:$0x1] %v1315
        %v1317 = vld [vmem:[%s411 + $0x3] sm:$0x1]
        %v1318 = vsel %vm581, %v1295, %v1317
        %1319 = vst [vmem:[%s411 + $0x3] sm:$0x1] %v1318
        %v1320 = vld [vmem:[%s411 + $0x4] sm:$0x1]
        %v1321 = vsel %vm581, %v1296, %v1320
        %1322 = vst [vmem:[%s411 + $0x4] sm:$0x1] %v1321
        %v1323 = vld [vmem:[%s411 + $0x5] sm:$0x1]
        %v1324 = vsel %vm581, %v1297, %v1323
        %1325 = vst [vmem:[%s411 + $0x5] sm:$0x1] %v1324
        %v1326 = vld [vmem:[%s411 + $0x6] sm:$0x1]
        %v1327 = vsel %vm581, %v1298, %v1326
        %1328 = vst [vmem:[%s411 + $0x6] sm:$0x1] %v1327
        %v1329 = vld [vmem:[%s411 + $0x7] sm:$0x1]
        %v1330 = vsel %vm581, %v1299, %v1329
        %1331 = vst [vmem:[%s411 + $0x7] sm:$0x1] %v1330
        %s1332 = smul.u32 8, %s23
        %p1333 = scmp.lt.s32.totalorder %s22, 1
        %s1334 = scalar_select %p1333, %s22, 1
        %p1335 = scmp.lt.s32.totalorder %s1332, 31
        %s1336 = scalar_select %p1335, %s1332, 31
        %s1337 = smul.addr %s1334, 32
        %s1338 = sadd.s32 %s1336, %s1337
        %s1339 = scalar_lea.vmem %s6, %s1338
        // Predicated region
        $region65: #{tpu_custom_call.1} parent=43 // pred_check
          %p1340 = pneg %p213
        $region66: #{tpu_custom_call.1} parent=43 // pred_check_branch
          %1342 = sbr.rel (%p1340) target = $region68
        $region67: #{tpu_custom_call.1} parent=43 // pred_region
          %s1343 = smul.u32 8, %s23
        $region68: #{tpu_custom_call.1} parent=43 // pred_fallthru
          _
      $region44: #{tpu_custom_call.1} parent=5 // pred_fallthru
        _
      %p1344 = scmp.le.s32.totalorder 2, %s13
      // Predicated region
      $region69: #{tpu_custom_call.1} parent=5 // pred_check
        %p1345 = pneg %p1344
      $region70: #{tpu_custom_call.1} parent=5 // pred_check_branch
        %1347 = sbr.rel (%p1345) target = $region72
      $region71: #{tpu_custom_call.1} parent=5 // pred_region
        %s1348 = ssub.s32 %s13, 2
        // Predicated region
        $region73: #{tpu_custom_call.1} parent=71 // pred_check
          %p1349 = pneg %p219
        $region74: #{tpu_custom_call.1} parent=71 // pred_check_branch
          %1351 = sbr.rel (%p1349) target = $region76
        $region75: #{tpu_custom_call.1} parent=71 // pred_region
          %s1352 = smul.u32 8, %s25
          %p1353 = scmp.lt.s32.totalorder %s24, 1
          %s1354 = scalar_select %p1353, %s24, 1
          %p1355 = scmp.lt.s32.totalorder %s1352, 31
          %s1356 = scalar_select %p1355, %s1352, 31
          %s1357 = smul.addr %s1354, 32
          %s1358 = sadd.s32 %s1356, %s1357
          %s1359 = scalar_lea.vmem %s6, %s1358
        $region76: #{tpu_custom_call.1} parent=71 // pred_fallthru
          _
      $region72: #{tpu_custom_call.1} parent=5 // pred_fallthru
        _
    $region6: #{tpu_custom_call.1} parent=1 // loop_footer
      %s17 = sadd.s32 1, %s13
    $region7: #{tpu_custom_call.1} parent=1 // loop_footer_branch
      %12 = sbr.rel target = $region3
    $region8: #{tpu_custom_call.1} parent=1 // loop_exit
      _
    %1360 = vsyncpa [#allocation4], 1
    %s1361 = scalar_lea.sflag [#allocation4], 1
    %1362 = vsyncpa %s1361, 1

</llo_original>
